<compile_context>
chip_gen: v6e
topology: v6e:2x2x1
jax: 0.10.0
libtpu: 0.0.40
codegen_flags: <defaults>
</compile_context>

<pallas_src>
import math

import jax
import jax.numpy as jnp
from jax.experimental import pallas as pl
from jax.experimental.pallas import tpu as pltpu

_LANES = 128
_F32 = jnp.float32


def _keypoints_kernel(r_ref, w_ref, pos_ref, scale_ref, out_ref):
    # r_ref, w_ref : (L*3, L*K*3)  resident replication / scaled-template weights
    # pos_ref      : (TG, L*3)     lane-dense position rows
    # scale_ref    : (TG, L*3)     lane-dense scale rows
    # out_ref      : (TG, L*K*3)   lane-dense output tile
    pos = pos_ref[...].astype(_F32)
    scale = scale_ref[...].astype(_F32)
    out = jnp.dot(pos, r_ref[...],
                  preferred_element_type=_F32,
                  precision=jax.lax.Precision.HIGHEST)
    out = out + jnp.dot(scale, w_ref[...],
                        preferred_element_type=_F32,
                        precision=jax.lax.Precision.HIGHEST)
    out_ref[...] = out.astype(out_ref.dtype)


def _sublane_multiple(*dtypes):
    # Minimum legal sublane tile: f32 -> 8, bf16 -> 16, int8/fp8 -> 32.
    sub = 8
    for dt in dtypes:
        itemsize = jnp.dtype(dt).itemsize
        sub = max(sub, 8 * max(1, 4 // itemsize))
    return sub


def _padded_row_bytes(width, itemsize):
    # VMEM pads the lane (last) dim to a multiple of 128.
    return -(-width // _LANES) * _LANES * itemsize


def _pick_row_tile(g, sub, rows_cap, single_step_max=1024):
    """Row-group tile: full extent when small (single grid step), otherwise the
    largest divisor of g that is a multiple of `sub`, fits the VMEM cap, and
    yields >= 2 grid steps (v7x megacore)."""
    if g <= sub:
        return g
    cap = max(sub, (min(rows_cap, g) // sub) * sub)
    if g <= cap and g <= single_step_max:
        return g
    if g > single_step_max:
        cap = min(cap, max(sub, (g // 2 // sub) * sub))
    best = 0
    t = sub
    while t <= cap:
        if g % t == 0:
            best = t
        t += sub
    return best if best else g


def sparse_gaussian_3d_keypoints(
    anchor_position: jax.Array,
    anchor_scale: jax.Array,
    offset_template: jax.Array,
    std: float = 0.5,
) -> jax.Array:
    """Pallas equivalent of SparseGaussian3DKeyPointsGenerator.forward."""
    B, N, C = anchor_position.shape
    assert C == 3 and anchor_scale.shape == (B, N, 3)
    K = offset_template.shape[0]
    assert offset_template.shape == (K, 3)

    out_dtype = jnp.result_type(
        anchor_position.dtype, anchor_scale.dtype, offset_template.dtype
    )

    M = B * N
    # Lane-dense row grouping: smallest power-of-two L making L*K*3 a multiple
    # of 128, reduced to a divisor of M (graceful degradation when M is odd).
    L = _LANES // math.gcd(K * 3, _LANES)
    L = math.gcd(L, M)
    G = M // L
    L3 = L * 3
    WOUT = L * K * 3

    # Free, contiguous reshapes of the row-major layouts.
    pos2d = anchor_position.reshape(G, L3)
    scale2d = anchor_scale.reshape(G, L3)

    # Tiny constant weight matrices (built once, outside the kernel):
    #   R[(l,c), (l',k,c')] = (l==l')(c==c')
    #   W[(l,c), (l',k,c')] = (l==l')(c==c') * std * offset_template[k, c']
    eyeL = jnp.eye(L, dtype=_F32)
    eye3 = jnp.eye(3, dtype=_F32)
    base = (eyeL[:, None, :, None] * eye3[None, :, None, :])[:, :, :, None, :]
    R = jnp.broadcast_to(base, (L, 3, L, K, 3)).reshape(L3, WOUT)
    tmpl = offset_template.astype(_F32) * _F32(std)
    W = (base * tmpl[None, None, None, :, :]).reshape(L3, WOUT)

    # Row-group tile size: dtype-sublane gated and VMEM-padding aware.
    sub = _sublane_multiple(anchor_position.dtype, anchor_scale.dtype, out_dtype)
    pos_item = jnp.dtype(anchor_position.dtype).itemsize
    sc_item = jnp.dtype(anchor_scale.dtype).itemsize
    out_item = jnp.dtype(out_dtype).itemsize
    per_row_group = 2 * (                           # x2 for double buffering
        _padded_row_bytes(L3, pos_item)
        + _padded_row_bytes(L3, sc_item)
        + _padded_row_bytes(WOUT, out_item)
    )
    resident = 2 * 2 * (-(-L3 // 8) * 8) * (-(-WOUT // _LANES) * _LANES) * 4
    budget = 12 * 1024 * 1024 - resident            # conservative across chips
    rows_cap = max(sub, budget // per_row_group)
    TG = _pick_row_tile(G, sub, rows_cap)
    assert G % TG == 0, (G, TG)
    grid = (G // TG,)

    cost = pl.CostEstimate(
        flops=2 * M * K * 3,
        transcendentals=0,
        bytes_accessed=(
            pos2d.size * pos_item
            + scale2d.size * sc_item
            + (R.size + W.size) * 4
            + M * K * 3 * out_item
        ),
    )

    out2d = pl.pallas_call(
        _keypoints_kernel,
        out_shape=jax.ShapeDtypeStruct((G, WOUT), out_dtype),
        grid_spec=pltpu.PrefetchScalarGridSpec(
            num_scalar_prefetch=0,
            grid=grid,
            in_specs=[
                pl.BlockSpec((L3, WOUT), lambda i: (0, 0)),   # R (resident)
                pl.BlockSpec((L3, WOUT), lambda i: (0, 0)),   # W (resident)
                pl.BlockSpec((TG, L3), lambda i: (i, 0)),     # positions
                pl.BlockSpec((TG, L3), lambda i: (i, 0)),     # scales
            ],
            out_specs=pl.BlockSpec((TG, WOUT), lambda i: (i, 0)),
        ),
        compiler_params=pltpu.CompilerParams(
            dimension_semantics=("parallel",),
        ),
        cost_estimate=cost,
    )(R, W, pos2d, scale2d)

    # Free reshape back to the PyTorch output layout.
    return out2d.reshape(B, N, K, 3)


def _reference(anchor_position, anchor_scale, offset_template, std=0.5):
    # Pure-JAX mirror of the PyTorch forward (correctness check).
    scaled_offset = (
        offset_template[None, None, :, :] * anchor_scale[:, :, None, :] * std
    )
    return anchor_position[:, :, None, :] + scaled_offset


if __name__ == "__main__":
    # Small deterministic shapes consistent with the module's forward.
    # M = B*N = 128, L = 16 -> lane-dense views (8, 48) -> (8, 384), grid (1,).
    B, N, K = 2, 64, 8
    std = 0.5

    key = jax.random.PRNGKey(0)
    k_pos, k_scale, k_tmpl = jax.random.split(key, 3)

    anchor_position = jax.random.normal(k_pos, (B, N, 3), dtype=jnp.float32)
    anchor_scale = jax.random.uniform(
        k_scale, (B, N, 3), dtype=jnp.float32, minval=0.1, maxval=2.0
    )
    # Deterministic "parameter" init (mimics torch.randn(num_keypoints, 3)).
    offset_template = jax.random.normal(k_tmpl, (K, 3), dtype=jnp.float32)

    out = sparse_gaussian_3d_keypoints(
        anchor_position, anchor_scale, offset_template, std=std
    )
    out = jax.block_until_ready(out)

    ref = _reference(anchor_position, anchor_scale, offset_template, std=std)
    assert out.shape == (B, N, K, 3), out.shape
    assert jnp.allclose(out, ref, atol=1e-5, rtol=1e-5), float(
        jnp.max(jnp.abs(out - ref))
    )

    print("KERNEL_OK")
</pallas_src>

<mosaic_0001>
module attributes {stable_mosaic.version = 11 : i64} {
  func.func @_keypoints_kernel(%arg0: i32, %arg1: memref<48x384xf32, #tpu.memory_space<vmem>>, %arg2: memref<48x384xf32, #tpu.memory_space<vmem>>, %arg3: memref<8x48xf32, #tpu.memory_space<vmem>>, %arg4: memref<8x48xf32, #tpu.memory_space<vmem>>, %arg5: memref<8x384xf32, #tpu.memory_space<vmem>>) attributes {dimension_semantics = [#tpu.dimension_semantics<parallel>], iteration_bounds = array<i64: 1>, scalar_prefetch = 0 : i64, scratch_operands = 0 : i64, tpu.core_type = #tpu.core_type<tc>, window_params = [{pipeline_mode = #tpu.pipeline_mode<synchronous>, transform_indices = @transform_0, window_bounds = array<i64: 48, 384>}, {pipeline_mode = #tpu.pipeline_mode<synchronous>, transform_indices = @transform_1, window_bounds = array<i64: 48, 384>}, {transform_indices = @transform_2, window_bounds = array<i64: 8, 48>}, {transform_indices = @transform_3, window_bounds = array<i64: 8, 48>}, {transform_indices = @transform_4, window_bounds = array<i64: 8, 384>}]} {
    %c0 = arith.constant 0 : index
    %c0_0 = arith.constant 0 : index
    %0 = vector.load %arg3[%c0, %c0_0] : memref<8x48xf32, #tpu.memory_space<vmem>>, vector<8x48xf32>
    %c0_1 = arith.constant 0 : index
    %c0_2 = arith.constant 0 : index
    %1 = vector.load %arg4[%c0_1, %c0_2] : memref<8x48xf32, #tpu.memory_space<vmem>>, vector<8x48xf32>
    %c0_3 = arith.constant 0 : index
    %c0_4 = arith.constant 0 : index
    %2 = vector.load %arg1[%c0_3, %c0_4] : memref<48x384xf32, #tpu.memory_space<vmem>>, vector<48x384xf32>
    %cst = arith.constant dense<0.000000e+00> : vector<8x384xf32>
    %3 = tpu.matmul %0, %2, %cst {dimension_numbers = #tpu.dot_dimension_numbers<[1], [0], [0], [1], [0, 0, 1, 1], [], []>, precision = #tpu.contract_precision<fp32>} : vector<8x48xf32>, vector<48x384xf32>, vector<8x384xf32> -> vector<8x384xf32>
    %c0_5 = arith.constant 0 : index
    %c0_6 = arith.constant 0 : index
    %4 = vector.load %arg2[%c0_5, %c0_6] : memref<48x384xf32, #tpu.memory_space<vmem>>, vector<48x384xf32>
    %cst_7 = arith.constant dense<0.000000e+00> : vector<8x384xf32>
    %5 = tpu.matmul %1, %4, %cst_7 {dimension_numbers = #tpu.dot_dimension_numbers<[1], [0], [0], [1], [0, 0, 1, 1], [], []>, precision = #tpu.contract_precision<fp32>} : vector<8x48xf32>, vector<48x384xf32>, vector<8x384xf32> -> vector<8x384xf32>
    %6 = arith.addf %3, %5 : vector<8x384xf32>
    %c0_8 = arith.constant 0 : index
    %c0_9 = arith.constant 0 : index
    %7 = vector.load %arg5[%c0_8, %c0_9] : memref<8x384xf32, #tpu.memory_space<vmem>>, vector<8x384xf32>
    tpu.vector_store %arg5[%c0_8, %c0_9], %6 {strides = array<i32>} : memref<8x384xf32, #tpu.memory_space<vmem>>, vector<8x384xf32>,
    return
  }
  func.func @transform_0(%arg0: i32) -> (i32, i32) {
    %c0_i32 = arith.constant 0 : i32
    %c0_i32_0 = arith.constant 0 : i32
    %c0_i32_1 = arith.constant 0 : i32
    return %c0_i32, %c0_i32_0 : i32, i32
  }
  func.func @transform_1(%arg0: i32) -> (i32, i32) {
    %c0_i32 = arith.constant 0 : i32
    %c0_i32_0 = arith.constant 0 : i32
    %c0_i32_1 = arith.constant 0 : i32
    return %c0_i32, %c0_i32_0 : i32, i32
  }
  func.func @transform_2(%arg0: i32) -> (i32, i32) {
    %c0_i32 = arith.constant 0 : i32
    %c0_i32_0 = arith.constant 0 : i32
    return %arg0, %c0_i32 : i32, i32
  }
  func.func @transform_3(%arg0: i32) -> (i32, i32) {
    %c0_i32 = arith.constant 0 : i32
    %c0_i32_0 = arith.constant 0 : i32
    return %arg0, %c0_i32 : i32, i32
  }
  func.func @transform_4(%arg0: i32) -> (i32, i32) {
    %c0_i32 = arith.constant 0 : i32
    %c0_i32_0 = arith.constant 0 : i32
    return %arg0, %c0_i32 : i32, i32
  }
}

</mosaic_0001>

<llo_original>
// kernel: tpu_custom_call.1
$region0: #{tpu_custom_call.1}
  #allocation0 [shape = 'u32[]', space=smem, size = 0x4, offset = 0x4, fixed_abs, tag = 'smem constant byte address 0x4 - core index']
  #allocation1 [shape = 'u32[144,128]{1,0:T(1,128)}', space=vmem, size = 0x12000, scoped, tag = 'internal scratch']
  %s0 = inlined_call_operand.hbm [shape: f32[48,384], index: 0, kind: input, shape index: {}]
  %s1 = inlined_call_operand.hbm [shape: f32[48,384], index: 1, kind: input, shape index: {}]
  %s2 = inlined_call_operand.hbm [shape: f32[8,48], index: 2, kind: input, shape index: {}]
  %s3 = inlined_call_operand.hbm [shape: f32[8,48], index: 3, kind: input, shape index: {}]
  %s4 = inlined_call_operand.hbm [shape: f32[8,384], index: 4, kind: output, shape index: {}]
  %s5 = sld [smem:[#allocation0]]
  $region42: #{tpu_custom_call.1} parent=0
    _
  %s7 = ssub.s32 1, %s5
  %s8 = scalar_select 0, %s7, %s5
  $region1: #{tpu_custom_call.1} parent=0
    #allocation2 [shape = 'u8[73728]{0}', space=vmem, size = 0x12000, scoped, tag = 'input window, operand 0, single buffered']
    #allocation3 [shape = 's32[1]{0}', space=sflag, size = 0x4, scoped, tag = 'scoped memory for tpu_custom_call.1']
    #allocation4 [shape = 's32[1]{0}', space=sflag, size = 0x4, scoped, tag = 'scoped memory for tpu_custom_call.1']
    #allocation5 [shape = 'u8[73728]{0}', space=vmem, size = 0x12000, scoped, tag = 'input window, operand 1, single buffered']
    #allocation6 [shape = 's32[1]{0}', space=sflag, size = 0x4, scoped, tag = 'scoped memory for tpu_custom_call.1']
    #allocation7 [shape = 'u8[4096]{0}', space=vmem, size = 0x1000, scoped, tag = 'input window, operand 2, single buffered']
    #allocation8 [shape = 'u8[4096]{0}', space=vmem, size = 0x1000, scoped, tag = 'input window, operand 3, single buffered']
    #allocation9 [shape = 's32[1]{0}', space=sflag, size = 0x4, scoped, tag = 'scoped memory for tpu_custom_call.1']
    #allocation10 [shape = 'u8[12288]{0}', space=vmem, size = 0x3000, scoped, tag = 'output window, operand 0, single buffered']
    %9 = vsyncpa [#allocation3], 0
    %10 = vsyncpa [#allocation6], 0
    %11 = vsyncpa [#allocation9], 0
    %12 = vsyncpa [#allocation4], 0
    // Predicated region
    $region2: #{tpu_custom_call.1} parent=1 // pred_check
      _
    $region3: #{tpu_custom_call.1} parent=1 // pred_check_branch
      %14 = sbr.rel (0) target = $region5
    $region4: #{tpu_custom_call.1} parent=1 // pred_region
      %s16 = ssub.s32 2304, 2304
      %17 = vsyncadd [#allocation3], %s16
      %s18 = sshll.u32 [#allocation2], 4
      %s19 = int_to_ptr.vmem [resolvable:$true] %s18
      %24 = dma.hbm_to_vmem [thread:$0]  %s0, 2304, %s19, [#allocation3], 384, 384, 24
    $region5: #{tpu_custom_call.1} parent=1 // pred_fallthru
      _
    // Predicated region
    $region6: #{tpu_custom_call.1} parent=1 // pred_check
      _
    $region7: #{tpu_custom_call.1} parent=1 // pred_check_branch
      %26 = sbr.rel (0) target = $region9
    $region8: #{tpu_custom_call.1} parent=1 // pred_region
      %s28 = ssub.s32 2304, 2304
      %29 = vsyncadd [#allocation6], %s28
      %s30 = sshll.u32 [#allocation5], 4
      %s31 = int_to_ptr.vmem [resolvable:$true] %s30
      %36 = dma.hbm_to_vmem [thread:$0]  %s1, 2304, %s31, [#allocation6], 384, 384, 24
    $region9: #{tpu_custom_call.1} parent=1 // pred_fallthru
      _
    // Predicated region
    $region10: #{tpu_custom_call.1} parent=1 // pred_check
      _
    $region11: #{tpu_custom_call.1} parent=1 // pred_check_branch
      %38 = sbr.rel (0) target = $region13
    $region12: #{tpu_custom_call.1} parent=1 // pred_region
      %s40 = ssub.s32 128, 128
      %41 = vsyncadd [#allocation6], %s40
      %s43 = sshll.u32 [#allocation7], 4
      %s44 = int_to_ptr.vmem [resolvable:$true] %s43
      %46 = dma.hbm_to_vmem [thread:$0]  %s2, 128, %s44, [#allocation6]
    $region13: #{tpu_custom_call.1} parent=1 // pred_fallthru
      _
    // Predicated region
    $region14: #{tpu_custom_call.1} parent=1 // pred_check
      _
    $region15: #{tpu_custom_call.1} parent=1 // pred_check_branch
      %48 = sbr.rel (0) target = $region17
    $region16: #{tpu_custom_call.1} parent=1 // pred_region
      %s50 = ssub.s32 128, 128
      %51 = vsyncadd [#allocation9], %s50
      %s53 = sshll.u32 [#allocation8], 4
      %s54 = int_to_ptr.vmem [resolvable:$true] %s53
      %56 = dma.hbm_to_vmem [thread:$0]  %s3, 128, %s54, [#allocation9]
    $region17: #{tpu_custom_call.1} parent=1 // pred_fallthru
      _
    // Predicated region
    $region18: #{tpu_custom_call.1} parent=1 // pred_check
      _
    $region19: #{tpu_custom_call.1} parent=1 // pred_check_branch
      %58 = sbr.rel (0) target = $region21
    $region20: #{tpu_custom_call.1} parent=1 // pred_region
      %59 = dma.done [#allocation3], 2304
    $region21: #{tpu_custom_call.1} parent=1 // pred_fallthru
      _
    // Predicated region
    $region22: #{tpu_custom_call.1} parent=1 // pred_check
      _
    $region23: #{tpu_custom_call.1} parent=1 // pred_check_branch
      %61 = sbr.rel (0) target = $region25
    $region24: #{tpu_custom_call.1} parent=1 // pred_region
      %62 = dma.done [#allocation6], 2304
    $region25: #{tpu_custom_call.1} parent=1 // pred_fallthru
      _
    // Predicated region
    $region26: #{tpu_custom_call.1} parent=1 // pred_check
      _
    $region27: #{tpu_custom_call.1} parent=1 // pred_check_branch
      %64 = sbr.rel (0) target = $region29
    $region28: #{tpu_custom_call.1} parent=1 // pred_region
      %65 = dma.done [#allocation6], 128
    $region29: #{tpu_custom_call.1} parent=1 // pred_fallthru
      _
    // Predicated region
    $region30: #{tpu_custom_call.1} parent=1 // pred_check
      _
    $region31: #{tpu_custom_call.1} parent=1 // pred_check_branch
      %67 = sbr.rel (0) target = $region33
    $region32: #{tpu_custom_call.1} parent=1 // pred_region
      %68 = dma.done [#allocation9], 128
    $region33: #{tpu_custom_call.1} parent=1 // pred_fallthru
      _
    %v69 = vld [vmem:[#allocation7] sm:$0xff]
    %v70 = vld [vmem:[#allocation8] sm:$0xff]
    %v71 = vld [vmem:[#allocation2] sm:$0xff]
    %v72 = vld [vmem:[#allocation2 + $0x8] sm:$0xff]
    %v73 = vld [vmem:[#allocation2 + $0x10] sm:$0xff]
    %v74 = vld [vmem:[#allocation2 + $0x18] sm:$0xff]
    %v75 = vld [vmem:[#allocation2 + $0x20] sm:$0xff]
    %v76 = vld [vmem:[#allocation2 + $0x28] sm:$0xff]
    %v77 = vld [vmem:[#allocation2 + $0x30] sm:$0xff]
    %v78 = vld [vmem:[#allocation2 + $0x38] sm:$0xff]
    %v79 = vld [vmem:[#allocation2 + $0x40] sm:$0xff]
    %v80 = vld [vmem:[#allocation2 + $0x48] sm:$0xff]
    %v81 = vld [vmem:[#allocation2 + $0x50] sm:$0xff]
    %v82 = vld [vmem:[#allocation2 + $0x58] sm:$0xff]
    %v83 = vld [vmem:[#allocation2 + $0x60] sm:$0xff]
    %v84 = vld [vmem:[#allocation2 + $0x68] sm:$0xff]
    %v85 = vld [vmem:[#allocation2 + $0x70] sm:$0xff]
    %v86 = vld [vmem:[#allocation2 + $0x78] sm:$0xff]
    %v87 = vld [vmem:[#allocation2 + $0x80] sm:$0xff]
    %v88 = vld [vmem:[#allocation2 + $0x88] sm:$0xff]
    %v89 = vld [vmem:[#allocation5] sm:$0xff]
    %v90 = vld [vmem:[#allocation5 + $0x8] sm:$0xff]
    %v91 = vld [vmem:[#allocation5 + $0x10] sm:$0xff]
    %v92 = vld [vmem:[#allocation5 + $0x18] sm:$0xff]
    %v93 = vld [vmem:[#allocation5 + $0x20] sm:$0xff]
    %v94 = vld [vmem:[#allocation5 + $0x28] sm:$0xff]
    %v95 = vld [vmem:[#allocation5 + $0x30] sm:$0xff]
    %v96 = vld [vmem:[#allocation5 + $0x38] sm:$0xff]
    %v97 = vld [vmem:[#allocation5 + $0x40] sm:$0xff]
    %v98 = vld [vmem:[#allocation5 + $0x48] sm:$0xff]
    %v99 = vld [vmem:[#allocation5 + $0x50] sm:$0xff]
    %v100 = vld [vmem:[#allocation5 + $0x58] sm:$0xff]
    %v101 = vld [vmem:[#allocation5 + $0x60] sm:$0xff]
    %v102 = vld [vmem:[#allocation5 + $0x68] sm:$0xff]
    %v103 = vld [vmem:[#allocation5 + $0x70] sm:$0xff]
    %v104 = vld [vmem:[#allocation5 + $0x78] sm:$0xff]
    %v105 = vld [vmem:[#allocation5 + $0x80] sm:$0xff]
    %v106 = vld [vmem:[#allocation5 + $0x88] sm:$0xff]
    %vm107 = vcmask 392192
    %v109 = vsel %vm107, %v70, 0
    %111 = vmatprep.subr.mxu0 0.0
    %112 = vmatpush1.msra.mxu0 0.0
    %113 = vmatprep.subr.mxu0 0.0
    %114 = vmatpush1.msra.mxu0 0.0
    %115 = vmatprep.subr.mxu0 0.0
    %116 = vmatpush1.msra.mxu0 0.0
    %117 = vmatprep.subr.mxu0 0.0
    %118 = vmatpush1.msra.mxu0 0.0
    %119 = vmatprep.subr.mxu0 0.0
    %120 = vmatpush1.msra.mxu0 0.0
    %121 = vmatprep.subr.mxu0 0.0
    %122 = vmatpush1.msra.mxu0 0.0
    %123 = vmatprep.subr.mxu0 0.0
    %124 = vmatpush1.msra.mxu0 0.0
    %125 = vmatprep.subr.mxu0 0.0
    %126 = vmatpush1.msra.mxu0 0.0
    %127 = vmatprep.subr.mxu0 0.0
    %128 = vmatpush1.msra.mxu0 0.0
    %129 = vmatprep.subr.mxu0 0.0
    %130 = vmatpush1.msra.mxu0 0.0
    %v131 = vand.u32 %v105, 4294901760
    %132 = vmatprep.subr.mxu0 %v131
    %v133 = vand.u32 %v104, 4294901760
    %134 = vmatpush1.msra.mxu0 %v133
    %v135 = vand.u32 %v102, 4294901760
    %136 = vmatprep.subr.mxu0 %v135
    %v137 = vand.u32 %v101, 4294901760
    %138 = vmatpush1.msra.mxu0 %v137
    %v139 = vand.u32 %v99, 4294901760
    %140 = vmatprep.subr.mxu0 %v139
    %v141 = vand.u32 %v98, 4294901760
    %142 = vmatpush1.msra.mxu0 %v141
    %v143 = vand.u32 %v96, 4294901760
    %144 = vmatprep.subr.mxu0 %v143
    %v145 = vand.u32 %v95, 4294901760
    %146 = vmatpush1.msra.mxu0 %v145
    %v147 = vand.u32 %v93, 4294901760
    %148 = vmatprep.subr.mxu0 %v147
    %v149 = vand.u32 %v92, 4294901760
    %150 = vmatpush1.msra.mxu0 %v149
    %v151 = vand.u32 %v90, 4294901760
    %152 = vmatprep.subr.mxu0 %v151
    %v153 = vand.u32 %v89, 4294901760
    %154 = vmatpush1.msra.mxu0 %v153
    %155 = vmatprep.subr.mxu0 0.0
    %156 = vmatpush2.msra.mxu0 0.0
    %157 = vmatprep.subr.mxu0 0.0
    %158 = vmatpush2.msra.mxu0 0.0
    %159 = vmatprep.subr.mxu0 0.0
    %160 = vmatpush2.msra.mxu0 0.0
    %161 = vmatprep.subr.mxu0 0.0
    %162 = vmatpush2.msra.mxu0 0.0
    %163 = vmatprep.subr.mxu0 0.0
    %164 = vmatpush2.msra.mxu0 0.0
    %165 = vmatprep.subr.mxu0 0.0
    %166 = vmatpush2.msra.mxu0 0.0
    %167 = vmatprep.subr.mxu0 0.0
    %168 = vmatpush2.msra.mxu0 0.0
    %169 = vmatprep.subr.mxu0 0.0
    %170 = vmatpush2.msra.mxu0 0.0
    %171 = vmatprep.subr.mxu0 0.0
    %172 = vmatpush2.msra.mxu0 0.0
    %173 = vmatprep.subr.mxu0 0.0
    %174 = vmatpush2.msra.mxu0 0.0
    %175 = vmatprep.subr.mxu0 0.0
    %176 = vmatpush2.msra.mxu0 0.0
    %177 = vmatprep.subr.mxu0 0.0
    %178 = vmatpush2.msra.mxu0 0.0
    %179 = vmatprep.subr.mxu0 0.0
    %180 = vmatpush2.msra.mxu0 0.0
    %181 = vmatprep.subr.mxu0 0.0
    %182 = vmatpush2.msra.mxu0 0.0
    %183 = vmatprep.subr.mxu0 0.0
    %184 = vmatpush2.msra.mxu0 0.0
    %185 = vmatprep.subr.mxu0 0.0
    %186 = vmatpush2.msra.mxu0 0.0
    %187 = vmatprep.mubr.f32.mxu0 0.0
    %v188 = vand.u32 %v109, 4294901760
    %v189 = vsub.f32 %v109, %v188
    %v190 = vand.u32 %v189, 4294901760
    %v191 = vsub.f32 %v189, %v190
    %v192 = vand.u32 %v191, 4294901760
    %193 = vmatmul.mubr.f32.gmra.mxu0 %v192
    %v194 = vpop.f32.mrf.mxu0
    %v195 = vadd.f32 0.0, %v194
    %v196 = vpop.f32.mrf.mxu0
    %v197 = vadd.f32 0.0, %v196
    %198 = vdwg.mxu0
    %199 = vmatprep.subr.mxu0 0.0
    %200 = vmatpush1.msra.mxu0 0.0
    %201 = vmatprep.subr.mxu0 0.0
    %202 = vmatpush1.msra.mxu0 0.0
    %203 = vmatprep.subr.mxu0 0.0
    %204 = vmatpush1.msra.mxu0 0.0
    %205 = vmatprep.subr.mxu0 0.0
    %206 = vmatpush1.msra.mxu0 0.0
    %207 = vmatprep.subr.mxu0 0.0
    %208 = vmatpush1.msra.mxu0 0.0
    %209 = vmatprep.subr.mxu0 0.0
    %210 = vmatpush1.msra.mxu0 0.0
    %211 = vmatprep.subr.mxu0 0.0
    %212 = vmatpush1.msra.mxu0 0.0
    %213 = vmatprep.subr.mxu0 0.0
    %214 = vmatpush1.msra.mxu0 0.0
    %215 = vmatprep.subr.mxu0 0.0
    %216 = vmatpush1.msra.mxu0 0.0
    %217 = vmatprep.subr.mxu0 0.0
    %218 = vmatpush1.msra.mxu0 0.0
    %v219 = vand.u32 %v105, 4294901760
    %v220 = vsub.f32 %v105, %v219
    %v221 = vand.u32 %v220, 4294901760
    %v222 = vsub.f32 %v220, %v221
    %v223 = vand.u32 %v222, 4294901760
    %224 = vmatprep.subr.mxu0 %v223
    %v225 = vand.u32 %v104, 4294901760
    %v226 = vsub.f32 %v104, %v225
    %v227 = vand.u32 %v226, 4294901760
    %v228 = vsub.f32 %v226, %v227
    %v229 = vand.u32 %v228, 4294901760
    %230 = vmatpush1.msra.mxu0 %v229
    %v231 = vand.u32 %v102, 4294901760
    %v232 = vsub.f32 %v102, %v231
    %v233 = vand.u32 %v232, 4294901760
    %v234 = vsub.f32 %v232, %v233
    %v235 = vand.u32 %v234, 4294901760
    %236 = vmatprep.subr.mxu0 %v235
    %v237 = vand.u32 %v101, 4294901760
    %v238 = vsub.f32 %v101, %v237
    %v239 = vand.u32 %v238, 4294901760
    %v240 = vsub.f32 %v238, %v239
    %v241 = vand.u32 %v240, 4294901760
    %242 = vmatpush1.msra.mxu0 %v241
    %v243 = vand.u32 %v99, 4294901760
    %v244 = vsub.f32 %v99, %v243
    %v245 = vand.u32 %v244, 4294901760
    %v246 = vsub.f32 %v244, %v245
    %v247 = vand.u32 %v246, 4294901760
    %248 = vmatprep.subr.mxu0 %v247
    %v249 = vand.u32 %v98, 4294901760
    %v250 = vsub.f32 %v98, %v249
    %v251 = vand.u32 %v250, 4294901760
    %v252 = vsub.f32 %v250, %v251
    %v253 = vand.u32 %v252, 4294901760
    %254 = vmatpush1.msra.mxu0 %v253
    %v255 = vand.u32 %v96, 4294901760
    %v256 = vsub.f32 %v96, %v255
    %v257 = vand.u32 %v256, 4294901760
    %v258 = vsub.f32 %v256, %v257
    %v259 = vand.u32 %v258, 4294901760
    %260 = vmatprep.subr.mxu0 %v259
    %v261 = vand.u32 %v95, 4294901760
    %v262 = vsub.f32 %v95, %v261
    %v263 = vand.u32 %v262, 4294901760
    %v264 = vsub.f32 %v262, %v263
    %v265 = vand.u32 %v264, 4294901760
    %266 = vmatpush1.msra.mxu0 %v265
    %v267 = vand.u32 %v93, 4294901760
    %v268 = vsub.f32 %v93, %v267
    %v269 = vand.u32 %v268, 4294901760
    %v270 = vsub.f32 %v268, %v269
    %v271 = vand.u32 %v270, 4294901760
    %272 = vmatprep.subr.mxu0 %v271
    %v273 = vand.u32 %v92, 4294901760
    %v274 = vsub.f32 %v92, %v273
    %v275 = vand.u32 %v274, 4294901760
    %v276 = vsub.f32 %v274, %v275
    %v277 = vand.u32 %v276, 4294901760
    %278 = vmatpush1.msra.mxu0 %v277
    %v279 = vand.u32 %v90, 4294901760
    %v280 = vsub.f32 %v90, %v279
    %v281 = vand.u32 %v280, 4294901760
    %v282 = vsub.f32 %v280, %v281
    %v283 = vand.u32 %v282, 4294901760
    %284 = vmatprep.subr.mxu0 %v283
    %v285 = vand.u32 %v89, 4294901760
    %v286 = vsub.f32 %v89, %v285
    %v287 = vand.u32 %v286, 4294901760
    %v288 = vsub.f32 %v286, %v287
    %v289 = vand.u32 %v288, 4294901760
    %290 = vmatpush1.msra.mxu0 %v289
    %291 = vmatprep.subr.mxu0 0.0
    %292 = vmatpush2.msra.mxu0 0.0
    %293 = vmatprep.subr.mxu0 0.0
    %294 = vmatpush2.msra.mxu0 0.0
    %295 = vmatprep.subr.mxu0 0.0
    %296 = vmatpush2.msra.mxu0 0.0
    %297 = vmatprep.subr.mxu0 0.0
    %298 = vmatpush2.msra.mxu0 0.0
    %299 = vmatprep.subr.mxu0 0.0
    %300 = vmatpush2.msra.mxu0 0.0
    %301 = vmatprep.subr.mxu0 0.0
    %302 = vmatpush2.msra.mxu0 0.0
    %303 = vmatprep.subr.mxu0 0.0
    %304 = vmatpush2.msra.mxu0 0.0
    %305 = vmatprep.subr.mxu0 0.0
    %306 = vmatpush2.msra.mxu0 0.0
    %307 = vmatprep.subr.mxu0 0.0
    %308 = vmatpush2.msra.mxu0 0.0
    %309 = vmatprep.subr.mxu0 0.0
    %310 = vmatpush2.msra.mxu0 0.0
    %311 = vmatprep.subr.mxu0 0.0
    %312 = vmatpush2.msra.mxu0 0.0
    %313 = vmatprep.subr.mxu0 0.0
    %314 = vmatpush2.msra.mxu0 0.0
    %315 = vmatprep.subr.mxu0 0.0
    %316 = vmatpush2.msra.mxu0 0.0
    %317 = vmatprep.subr.mxu0 0.0
    %318 = vmatpush2.msra.mxu0 0.0
    %319 = vmatprep.subr.mxu0 0.0
    %320 = vmatpush2.msra.mxu0 0.0
    %321 = vmatprep.subr.mxu0 0.0
    %322 = vmatpush2.msra.mxu0 0.0
    %323 = vmatprep.mubr.f32.mxu0 0.0
    %v324 = vand.u32 %v109, 4294901760
    %325 = vmatmul.mubr.f32.gmra.mxu0 %v324
    %v326 = vpop.f32.mrf.mxu0
    %v327 = vadd.f32 %v195, %v326
    %v328 = vpop.f32.mrf.mxu0
    %v329 = vadd.f32 %v197, %v328
    %330 = vdwg.mxu0
    %331 = vmatprep.subr.mxu0 0.0
    %332 = vmatpush1.msra.mxu0 0.0
    %333 = vmatprep.subr.mxu0 0.0
    %334 = vmatpush1.msra.mxu0 0.0
    %335 = vmatprep.subr.mxu0 0.0
    %336 = vmatpush1.msra.mxu0 0.0
    %337 = vmatprep.subr.mxu0 0.0
    %338 = vmatpush1.msra.mxu0 0.0
    %339 = vmatprep.subr.mxu0 0.0
    %340 = vmatpush1.msra.mxu0 0.0
    %341 = vmatprep.subr.mxu0 0.0
    %342 = vmatpush1.msra.mxu0 0.0
    %343 = vmatprep.subr.mxu0 0.0
    %344 = vmatpush1.msra.mxu0 0.0
    %345 = vmatprep.subr.mxu0 0.0
    %346 = vmatpush1.msra.mxu0 0.0
    %347 = vmatprep.subr.mxu0 0.0
    %348 = vmatpush1.msra.mxu0 0.0
    %349 = vmatprep.subr.mxu0 0.0
    %350 = vmatpush1.msra.mxu0 0.0
    %v351 = vand.u32 %v105, 4294901760
    %v352 = vsub.f32 %v105, %v351
    %353 = vmatprep.subr.mxu0 %v352
    %v354 = vand.u32 %v104, 4294901760
    %v355 = vsub.f32 %v104, %v354
    %356 = vmatpush1.msra.mxu0 %v355
    %v357 = vand.u32 %v102, 4294901760
    %v358 = vsub.f32 %v102, %v357
    %359 = vmatprep.subr.mxu0 %v358
    %v360 = vand.u32 %v101, 4294901760
    %v361 = vsub.f32 %v101, %v360
    %362 = vmatpush1.msra.mxu0 %v361
    %v363 = vand.u32 %v99, 4294901760
    %v364 = vsub.f32 %v99, %v363
    %365 = vmatprep.subr.mxu0 %v364
    %v366 = vand.u32 %v98, 4294901760
    %v367 = vsub.f32 %v98, %v366
    %368 = vmatpush1.msra.mxu0 %v367
    %v369 = vand.u32 %v96, 4294901760
    %v370 = vsub.f32 %v96, %v369
    %371 = vmatprep.subr.mxu0 %v370
    %v372 = vand.u32 %v95, 4294901760
    %v373 = vsub.f32 %v95, %v372
    %374 = vmatpush1.msra.mxu0 %v373
    %v375 = vand.u32 %v93, 4294901760
    %v376 = vsub.f32 %v93, %v375
    %377 = vmatprep.subr.mxu0 %v376
    %v378 = vand.u32 %v92, 4294901760
    %v379 = vsub.f32 %v92, %v378
    %380 = vmatpush1.msra.mxu0 %v379
    %v381 = vand.u32 %v90, 4294901760
    %v382 = vsub.f32 %v90, %v381
    %383 = vmatprep.subr.mxu0 %v382
    %v384 = vand.u32 %v89, 4294901760
    %v385 = vsub.f32 %v89, %v384
    %386 = vmatpush1.msra.mxu0 %v385
    %387 = vmatprep.subr.mxu0 0.0
    %388 = vmatpush2.msra.mxu0 0.0
    %389 = vmatprep.subr.mxu0 0.0
    %390 = vmatpush2.msra.mxu0 0.0
    %391 = vmatprep.subr.mxu0 0.0
    %392 = vmatpush2.msra.mxu0 0.0
    %393 = vmatprep.subr.mxu0 0.0
    %394 = vmatpush2.msra.mxu0 0.0
    %395 = vmatprep.subr.mxu0 0.0
    %396 = vmatpush2.msra.mxu0 0.0
    %397 = vmatprep.subr.mxu0 0.0
    %398 = vmatpush2.msra.mxu0 0.0
    %399 = vmatprep.subr.mxu0 0.0
    %400 = vmatpush2.msra.mxu0 0.0
    %401 = vmatprep.subr.mxu0 0.0
    %402 = vmatpush2.msra.mxu0 0.0
    %403 = vmatprep.subr.mxu0 0.0
    %404 = vmatpush2.msra.mxu0 0.0
    %405 = vmatprep.subr.mxu0 0.0
    %406 = vmatpush2.msra.mxu0 0.0
    %407 = vmatprep.subr.mxu0 0.0
    %408 = vmatpush2.msra.mxu0 0.0
    %409 = vmatprep.subr.mxu0 0.0
    %410 = vmatpush2.msra.mxu0 0.0
    %411 = vmatprep.subr.mxu0 0.0
    %412 = vmatpush2.msra.mxu0 0.0
    %413 = vmatprep.subr.mxu0 0.0
    %414 = vmatpush2.msra.mxu0 0.0
    %415 = vmatprep.subr.mxu0 0.0
    %416 = vmatpush2.msra.mxu0 0.0
    %417 = vmatprep.subr.mxu0 0.0
    %418 = vmatpush2.msra.mxu0 0.0
    %419 = vmatprep.mubr.f32.mxu0 0.0
    %v420 = vand.u32 %v109, 4294901760
    %v421 = vsub.f32 %v109, %v420
    %422 = vmatmul.mubr.f32.gmra.mxu0 %v421
    %v423 = vpop.f32.mrf.mxu0
    %v424 = vadd.f32 %v327, %v423
    %v425 = vpop.f32.mrf.mxu0
    %v426 = vadd.f32 %v329, %v425
    %427 = vdwg.mxu0
    %428 = vmatprep.subr.mxu0 0.0
    %429 = vmatpush1.msra.mxu0 0.0
    %430 = vmatprep.subr.mxu0 0.0
    %431 = vmatpush1.msra.mxu0 0.0
    %432 = vmatprep.subr.mxu0 0.0
    %433 = vmatpush1.msra.mxu0 0.0
    %434 = vmatprep.subr.mxu0 0.0
    %435 = vmatpush1.msra.mxu0 0.0
    %436 = vmatprep.subr.mxu0 0.0
    %437 = vmatpush1.msra.mxu0 0.0
    %438 = vmatprep.subr.mxu0 0.0
    %439 = vmatpush1.msra.mxu0 0.0
    %440 = vmatprep.subr.mxu0 0.0
    %441 = vmatpush1.msra.mxu0 0.0
    %442 = vmatprep.subr.mxu0 0.0
    %443 = vmatpush1.msra.mxu0 0.0
    %444 = vmatprep.subr.mxu0 0.0
    %445 = vmatpush1.msra.mxu0 0.0
    %446 = vmatprep.subr.mxu0 0.0
    %447 = vmatpush1.msra.mxu0 0.0
    %v448 = vand.u32 %v105, 4294901760
    %449 = vmatprep.subr.mxu0 %v448
    %v450 = vand.u32 %v104, 4294901760
    %451 = vmatpush1.msra.mxu0 %v450
    %v452 = vand.u32 %v102, 4294901760
    %453 = vmatprep.subr.mxu0 %v452
    %v454 = vand.u32 %v101, 4294901760
    %455 = vmatpush1.msra.mxu0 %v454
    %v456 = vand.u32 %v99, 4294901760
    %457 = vmatprep.subr.mxu0 %v456
    %v458 = vand.u32 %v98, 4294901760
    %459 = vmatpush1.msra.mxu0 %v458
    %v460 = vand.u32 %v96, 4294901760
    %461 = vmatprep.subr.mxu0 %v460
    %v462 = vand.u32 %v95, 4294901760
    %463 = vmatpush1.msra.mxu0 %v462
    %v464 = vand.u32 %v93, 4294901760
    %465 = vmatprep.subr.mxu0 %v464
    %v466 = vand.u32 %v92, 4294901760
    %467 = vmatpush1.msra.mxu0 %v466
    %v468 = vand.u32 %v90, 4294901760
    %469 = vmatprep.subr.mxu0 %v468
    %v470 = vand.u32 %v89, 4294901760
    %471 = vmatpush1.msra.mxu0 %v470
    %472 = vmatprep.subr.mxu0 0.0
    %473 = vmatpush2.msra.mxu0 0.0
    %474 = vmatprep.subr.mxu0 0.0
    %475 = vmatpush2.msra.mxu0 0.0
    %476 = vmatprep.subr.mxu0 0.0
    %477 = vmatpush2.msra.mxu0 0.0
    %478 = vmatprep.subr.mxu0 0.0
    %479 = vmatpush2.msra.mxu0 0.0
    %480 = vmatprep.subr.mxu0 0.0
    %481 = vmatpush2.msra.mxu0 0.0
    %482 = vmatprep.subr.mxu0 0.0
    %483 = vmatpush2.msra.mxu0 0.0
    %484 = vmatprep.subr.mxu0 0.0
    %485 = vmatpush2.msra.mxu0 0.0
    %486 = vmatprep.subr.mxu0 0.0
    %487 = vmatpush2.msra.mxu0 0.0
    %488 = vmatprep.subr.mxu0 0.0
    %489 = vmatpush2.msra.mxu0 0.0
    %490 = vmatprep.subr.mxu0 0.0
    %491 = vmatpush2.msra.mxu0 0.0
    %492 = vmatprep.subr.mxu0 0.0
    %493 = vmatpush2.msra.mxu0 0.0
    %494 = vmatprep.subr.mxu0 0.0
    %495 = vmatpush2.msra.mxu0 0.0
    %496 = vmatprep.subr.mxu0 0.0
    %497 = vmatpush2.msra.mxu0 0.0
    %498 = vmatprep.subr.mxu0 0.0
    %499 = vmatpush2.msra.mxu0 0.0
    %500 = vmatprep.subr.mxu0 0.0
    %501 = vmatpush2.msra.mxu0 0.0
    %502 = vmatprep.subr.mxu0 0.0
    %503 = vmatpush2.msra.mxu0 0.0
    %504 = vmatprep.mubr.f32.mxu0 0.0
    %v505 = vand.u32 %v109, 4294901760
    %v506 = vsub.f32 %v109, %v505
    %v507 = vand.u32 %v506, 4294901760
    %508 = vmatmul.mubr.f32.gmra.mxu0 %v507
    %v509 = vpop.f32.mrf.mxu0
    %v510 = vadd.f32 %v424, %v509
    %v511 = vpop.f32.mrf.mxu0
    %v512 = vadd.f32 %v426, %v511
    %513 = vdwg.mxu0
    %514 = vmatprep.subr.mxu0 0.0
    %515 = vmatpush1.msra.mxu0 0.0
    %516 = vmatprep.subr.mxu0 0.0
    %517 = vmatpush1.msra.mxu0 0.0
    %518 = vmatprep.subr.mxu0 0.0
    %519 = vmatpush1.msra.mxu0 0.0
    %520 = vmatprep.subr.mxu0 0.0
    %521 = vmatpush1.msra.mxu0 0.0
    %522 = vmatprep.subr.mxu0 0.0
    %523 = vmatpush1.msra.mxu0 0.0
    %524 = vmatprep.subr.mxu0 0.0
    %525 = vmatpush1.msra.mxu0 0.0
    %526 = vmatprep.subr.mxu0 0.0
    %527 = vmatpush1.msra.mxu0 0.0
    %528 = vmatprep.subr.mxu0 0.0
    %529 = vmatpush1.msra.mxu0 0.0
    %530 = vmatprep.subr.mxu0 0.0
    %531 = vmatpush1.msra.mxu0 0.0
    %532 = vmatprep.subr.mxu0 0.0
    %533 = vmatpush1.msra.mxu0 0.0
    %v534 = vand.u32 %v105, 4294901760
    %v535 = vsub.f32 %v105, %v534
    %v536 = vand.u32 %v535, 4294901760
    %537 = vmatprep.subr.mxu0 %v536
    %v538 = vand.u32 %v104, 4294901760
    %v539 = vsub.f32 %v104, %v538
    %v540 = vand.u32 %v539, 4294901760
    %541 = vmatpush1.msra.mxu0 %v540
    %v542 = vand.u32 %v102, 4294901760
    %v543 = vsub.f32 %v102, %v542
    %v544 = vand.u32 %v543, 4294901760
    %545 = vmatprep.subr.mxu0 %v544
    %v546 = vand.u32 %v101, 4294901760
    %v547 = vsub.f32 %v101, %v546
    %v548 = vand.u32 %v547, 4294901760
    %549 = vmatpush1.msra.mxu0 %v548
    %v550 = vand.u32 %v99, 4294901760
    %v551 = vsub.f32 %v99, %v550
    %v552 = vand.u32 %v551, 4294901760
    %553 = vmatprep.subr.mxu0 %v552
    %v554 = vand.u32 %v98, 4294901760
    %v555 = vsub.f32 %v98, %v554
    %v556 = vand.u32 %v555, 4294901760
    %557 = vmatpush1.msra.mxu0 %v556
    %v558 = vand.u32 %v96, 4294901760
    %v559 = vsub.f32 %v96, %v558
    %v560 = vand.u32 %v559, 4294901760
    %561 = vmatprep.subr.mxu0 %v560
    %v562 = vand.u32 %v95, 4294901760
    %v563 = vsub.f32 %v95, %v562
    %v564 = vand.u32 %v563, 4294901760
    %565 = vmatpush1.msra.mxu0 %v564
    %v566 = vand.u32 %v93, 4294901760
    %v567 = vsub.f32 %v93, %v566
    %v568 = vand.u32 %v567, 4294901760
    %569 = vmatprep.subr.mxu0 %v568
    %v570 = vand.u32 %v92, 4294901760
    %v571 = vsub.f32 %v92, %v570
    %v572 = vand.u32 %v571, 4294901760
    %573 = vmatpush1.msra.mxu0 %v572
    %v574 = vand.u32 %v90, 4294901760
    %v575 = vsub.f32 %v90, %v574
    %v576 = vand.u32 %v575, 4294901760
    %577 = vmatprep.subr.mxu0 %v576
    %v578 = vand.u32 %v89, 4294901760
    %v579 = vsub.f32 %v89, %v578
    %v580 = vand.u32 %v579, 4294901760
    %581 = vmatpush1.msra.mxu0 %v580
    %582 = vmatprep.subr.mxu0 0.0
    %583 = vmatpush2.msra.mxu0 0.0
    %584 = vmatprep.subr.mxu0 0.0
    %585 = vmatpush2.msra.mxu0 0.0
    %586 = vmatprep.subr.mxu0 0.0
    %587 = vmatpush2.msra.mxu0 0.0
    %588 = vmatprep.subr.mxu0 0.0
    %589 = vmatpush2.msra.mxu0 0.0
    %590 = vmatprep.subr.mxu0 0.0
    %591 = vmatpush2.msra.mxu0 0.0
    %592 = vmatprep.subr.mxu0 0.0
    %593 = vmatpush2.msra.mxu0 0.0
    %594 = vmatprep.subr.mxu0 0.0
    %595 = vmatpush2.msra.mxu0 0.0
    %596 = vmatprep.subr.mxu0 0.0
    %597 = vmatpush2.msra.mxu0 0.0
    %598 = vmatprep.subr.mxu0 0.0
    %599 = vmatpush2.msra.mxu0 0.0
    %600 = vmatprep.subr.mxu0 0.0
    %601 = vmatpush2.msra.mxu0 0.0
    %602 = vmatprep.subr.mxu0 0.0
    %603 = vmatpush2.msra.mxu0 0.0
    %604 = vmatprep.subr.mxu0 0.0
    %605 = vmatpush2.msra.mxu0 0.0
    %606 = vmatprep.subr.mxu0 0.0
    %607 = vmatpush2.msra.mxu0 0.0
    %608 = vmatprep.subr.mxu0 0.0
    %609 = vmatpush2.msra.mxu0 0.0
    %610 = vmatprep.subr.mxu0 0.0
    %611 = vmatpush2.msra.mxu0 0.0
    %612 = vmatprep.subr.mxu0 0.0
    %613 = vmatpush2.msra.mxu0 0.0
    %614 = vmatprep.mubr.f32.mxu0 0.0
    %v615 = vand.u32 %v109, 4294901760
    %616 = vmatmul.mubr.f32.gmra.mxu0 %v615
    %v617 = vpop.f32.mrf.mxu0
    %v618 = vadd.f32 %v510, %v617
    %v619 = vpop.f32.mrf.mxu0
    %v620 = vadd.f32 %v512, %v619
    %621 = vdwg.mxu0
    %622 = vmatprep.subr.mxu0 0.0
    %623 = vmatpush1.msra.mxu0 0.0
    %624 = vmatprep.subr.mxu0 0.0
    %625 = vmatpush1.msra.mxu0 0.0
    %626 = vmatprep.subr.mxu0 0.0
    %627 = vmatpush1.msra.mxu0 0.0
    %628 = vmatprep.subr.mxu0 0.0
    %629 = vmatpush1.msra.mxu0 0.0
    %630 = vmatprep.subr.mxu0 0.0
    %631 = vmatpush1.msra.mxu0 0.0
    %632 = vmatprep.subr.mxu0 0.0
    %633 = vmatpush1.msra.mxu0 0.0
    %634 = vmatprep.subr.mxu0 0.0
    %635 = vmatpush1.msra.mxu0 0.0
    %636 = vmatprep.subr.mxu0 0.0
    %637 = vmatpush1.msra.mxu0 0.0
    %638 = vmatprep.subr.mxu0 0.0
    %639 = vmatpush1.msra.mxu0 0.0
    %640 = vmatprep.subr.mxu0 0.0
    %641 = vmatpush1.msra.mxu0 0.0
    %v642 = vand.u32 %v105, 4294901760
    %643 = vmatprep.subr.mxu0 %v642
    %v644 = vand.u32 %v104, 4294901760
    %645 = vmatpush1.msra.mxu0 %v644
    %v646 = vand.u32 %v102, 4294901760
    %647 = vmatprep.subr.mxu0 %v646
    %v648 = vand.u32 %v101, 4294901760
    %649 = vmatpush1.msra.mxu0 %v648
    %v650 = vand.u32 %v99, 4294901760
    %651 = vmatprep.subr.mxu0 %v650
    %v652 = vand.u32 %v98, 4294901760
    %653 = vmatpush1.msra.mxu0 %v652
    %v654 = vand.u32 %v96, 4294901760
    %655 = vmatprep.subr.mxu0 %v654
    %v656 = vand.u32 %v95, 4294901760
    %657 = vmatpush1.msra.mxu0 %v656
    %v658 = vand.u32 %v93, 4294901760
    %659 = vmatprep.subr.mxu0 %v658
    %v660 = vand.u32 %v92, 4294901760
    %661 = vmatpush1.msra.mxu0 %v660
    %v662 = vand.u32 %v90, 4294901760
    %663 = vmatprep.subr.mxu0 %v662
    %v664 = vand.u32 %v89, 4294901760
    %665 = vmatpush1.msra.mxu0 %v664
    %666 = vmatprep.subr.mxu0 0.0
    %667 = vmatpush2.msra.mxu0 0.0
    %668 = vmatprep.subr.mxu0 0.0
    %669 = vmatpush2.msra.mxu0 0.0
    %670 = vmatprep.subr.mxu0 0.0
    %671 = vmatpush2.msra.mxu0 0.0
    %672 = vmatprep.subr.mxu0 0.0
    %673 = vmatpush2.msra.mxu0 0.0
    %674 = vmatprep.subr.mxu0 0.0
    %675 = vmatpush2.msra.mxu0 0.0
    %676 = vmatprep.subr.mxu0 0.0
    %677 = vmatpush2.msra.mxu0 0.0
    %678 = vmatprep.subr.mxu0 0.0
    %679 = vmatpush2.msra.mxu0 0.0
    %680 = vmatprep.subr.mxu0 0.0
    %681 = vmatpush2.msra.mxu0 0.0
    %682 = vmatprep.subr.mxu0 0.0
    %683 = vmatpush2.msra.mxu0 0.0
    %684 = vmatprep.subr.mxu0 0.0
    %685 = vmatpush2.msra.mxu0 0.0
    %686 = vmatprep.subr.mxu0 0.0
    %687 = vmatpush2.msra.mxu0 0.0
    %688 = vmatprep.subr.mxu0 0.0
    %689 = vmatpush2.msra.mxu0 0.0
    %690 = vmatprep.subr.mxu0 0.0
    %691 = vmatpush2.msra.mxu0 0.0
    %692 = vmatprep.subr.mxu0 0.0
    %693 = vmatpush2.msra.mxu0 0.0
    %694 = vmatprep.subr.mxu0 0.0
    %695 = vmatpush2.msra.mxu0 0.0
    %696 = vmatprep.subr.mxu0 0.0
    %697 = vmatpush2.msra.mxu0 0.0
    %698 = vmatprep.mubr.f32.mxu0 0.0
    %v699 = vand.u32 %v109, 4294901760
    %700 = vmatmul.mubr.f32.gmra.mxu0 %v699
    %v701 = vpop.f32.mrf.mxu0
    %v702 = vadd.f32 %v618, %v701
    %v703 = vpop.f32.mrf.mxu0
    %v704 = vadd.f32 %v620, %v703
    %705 = vdwg.mxu0
    %706 = vmatprep.subr.mxu0 0.0
    %707 = vmatpush1.msra.mxu0 0.0
    %708 = vmatprep.subr.mxu0 0.0
    %709 = vmatpush1.msra.mxu0 0.0
    %710 = vmatprep.subr.mxu0 0.0
    %711 = vmatpush1.msra.mxu0 0.0
    %712 = vmatprep.subr.mxu0 0.0
    %713 = vmatpush1.msra.mxu0 0.0
    %714 = vmatprep.subr.mxu0 0.0
    %715 = vmatpush1.msra.mxu0 0.0
    %716 = vmatprep.subr.mxu0 0.0
    %717 = vmatpush1.msra.mxu0 0.0
    %718 = vmatprep.subr.mxu0 0.0
    %719 = vmatpush1.msra.mxu0 0.0
    %720 = vmatprep.subr.mxu0 0.0
    %721 = vmatpush1.msra.mxu0 0.0
    %722 = vmatprep.subr.mxu0 0.0
    %723 = vmatpush1.msra.mxu0 0.0
    %724 = vmatprep.subr.mxu0 0.0
    %725 = vmatpush1.msra.mxu0 0.0
    %726 = vmatprep.subr.mxu0 0.0
    %v727 = vand.u32 %v106, 4294901760
    %728 = vmatpush1.msra.mxu0 %v727
    %729 = vmatprep.subr.mxu0 0.0
    %v730 = vand.u32 %v103, 4294901760
    %731 = vmatpush1.msra.mxu0 %v730
    %732 = vmatprep.subr.mxu0 0.0
    %v733 = vand.u32 %v100, 4294901760
    %734 = vmatpush1.msra.mxu0 %v733
    %735 = vmatprep.subr.mxu0 0.0
    %v736 = vand.u32 %v97, 4294901760
    %737 = vmatpush1.msra.mxu0 %v736
    %738 = vmatprep.subr.mxu0 0.0
    %v739 = vand.u32 %v94, 4294901760
    %740 = vmatpush1.msra.mxu0 %v739
    %741 = vmatprep.subr.mxu0 0.0
    %v742 = vand.u32 %v91, 4294901760
    %743 = vmatpush1.msra.mxu0 %v742
    %744 = vmatprep.subr.mxu0 0.0
    %745 = vmatpush2.msra.mxu0 0.0
    %746 = vmatprep.subr.mxu0 0.0
    %747 = vmatpush2.msra.mxu0 0.0
    %748 = vmatprep.subr.mxu0 0.0
    %749 = vmatpush2.msra.mxu0 0.0
    %750 = vmatprep.subr.mxu0 0.0
    %751 = vmatpush2.msra.mxu0 0.0
    %752 = vmatprep.subr.mxu0 0.0
    %753 = vmatpush2.msra.mxu0 0.0
    %754 = vmatprep.subr.mxu0 0.0
    %755 = vmatpush2.msra.mxu0 0.0
    %756 = vmatprep.subr.mxu0 0.0
    %757 = vmatpush2.msra.mxu0 0.0
    %758 = vmatprep.subr.mxu0 0.0
    %759 = vmatpush2.msra.mxu0 0.0
    %760 = vmatprep.subr.mxu0 0.0
    %761 = vmatpush2.msra.mxu0 0.0
    %762 = vmatprep.subr.mxu0 0.0
    %763 = vmatpush2.msra.mxu0 0.0
    %764 = vmatprep.subr.mxu0 0.0
    %765 = vmatpush2.msra.mxu0 0.0
    %766 = vmatprep.subr.mxu0 0.0
    %767 = vmatpush2.msra.mxu0 0.0
    %768 = vmatprep.subr.mxu0 0.0
    %769 = vmatpush2.msra.mxu0 0.0
    %770 = vmatprep.subr.mxu0 0.0
    %771 = vmatpush2.msra.mxu0 0.0
    %772 = vmatprep.subr.mxu0 0.0
    %773 = vmatpush2.msra.mxu0 0.0
    %774 = vmatprep.subr.mxu0 0.0
    %775 = vmatpush2.msra.mxu0 0.0
    %776 = vmatprep.mubr.f32.mxu0 0.0
    %v777 = vand.u32 %v109, 4294901760
    %v778 = vsub.f32 %v109, %v777
    %v779 = vand.u32 %v778, 4294901760
    %v780 = vsub.f32 %v778, %v779
    %v781 = vand.u32 %v780, 4294901760
    %782 = vmatmul.mubr.f32.gmra.mxu0 %v781
    %v783 = vpop.f32.mrf.mxu0
    %v784 = vadd.f32 0.0, %v783
    %v785 = vpop.f32.mrf.mxu0
    %786 = vdwg.mxu0
    %787 = vmatprep.subr.mxu0 0.0
    %788 = vmatpush1.msra.mxu0 0.0
    %789 = vmatprep.subr.mxu0 0.0
    %790 = vmatpush1.msra.mxu0 0.0
    %791 = vmatprep.subr.mxu0 0.0
    %792 = vmatpush1.msra.mxu0 0.0
    %793 = vmatprep.subr.mxu0 0.0
    %794 = vmatpush1.msra.mxu0 0.0
    %795 = vmatprep.subr.mxu0 0.0
    %796 = vmatpush1.msra.mxu0 0.0
    %797 = vmatprep.subr.mxu0 0.0
    %798 = vmatpush1.msra.mxu0 0.0
    %799 = vmatprep.subr.mxu0 0.0
    %800 = vmatpush1.msra.mxu0 0.0
    %801 = vmatprep.subr.mxu0 0.0
    %802 = vmatpush1.msra.mxu0 0.0
    %803 = vmatprep.subr.mxu0 0.0
    %804 = vmatpush1.msra.mxu0 0.0
    %805 = vmatprep.subr.mxu0 0.0
    %806 = vmatpush1.msra.mxu0 0.0
    %807 = vmatprep.subr.mxu0 0.0
    %v808 = vand.u32 %v106, 4294901760
    %v809 = vsub.f32 %v106, %v808
    %v810 = vand.u32 %v809, 4294901760
    %v811 = vsub.f32 %v809, %v810
    %v812 = vand.u32 %v811, 4294901760
    %813 = vmatpush1.msra.mxu0 %v812
    %814 = vmatprep.subr.mxu0 0.0
    %v815 = vand.u32 %v103, 4294901760
    %v816 = vsub.f32 %v103, %v815
    %v817 = vand.u32 %v816, 4294901760
    %v818 = vsub.f32 %v816, %v817
    %v819 = vand.u32 %v818, 4294901760
    %820 = vmatpush1.msra.mxu0 %v819
    %821 = vmatprep.subr.mxu0 0.0
    %v822 = vand.u32 %v100, 4294901760
    %v823 = vsub.f32 %v100, %v822
    %v824 = vand.u32 %v823, 4294901760
    %v825 = vsub.f32 %v823, %v824
    %v826 = vand.u32 %v825, 4294901760
    %827 = vmatpush1.msra.mxu0 %v826
    %828 = vmatprep.subr.mxu0 0.0
    %v829 = vand.u32 %v97, 4294901760
    %v830 = vsub.f32 %v97, %v829
    %v831 = vand.u32 %v830, 4294901760
    %v832 = vsub.f32 %v830, %v831
    %v833 = vand.u32 %v832, 4294901760
    %834 = vmatpush1.msra.mxu0 %v833
    %835 = vmatprep.subr.mxu0 0.0
    %v836 = vand.u32 %v94, 4294901760
    %v837 = vsub.f32 %v94, %v836
    %v838 = vand.u32 %v837, 4294901760
    %v839 = vsub.f32 %v837, %v838
    %v840 = vand.u32 %v839, 4294901760
    %841 = vmatpush1.msra.mxu0 %v840
    %842 = vmatprep.subr.mxu0 0.0
    %v843 = vand.u32 %v91, 4294901760
    %v844 = vsub.f32 %v91, %v843
    %v845 = vand.u32 %v844, 4294901760
    %v846 = vsub.f32 %v844, %v845
    %v847 = vand.u32 %v846, 4294901760
    %848 = vmatpush1.msra.mxu0 %v847
    %849 = vmatprep.subr.mxu0 0.0
    %850 = vmatpush2.msra.mxu0 0.0
    %851 = vmatprep.subr.mxu0 0.0
    %852 = vmatpush2.msra.mxu0 0.0
    %853 = vmatprep.subr.mxu0 0.0
    %854 = vmatpush2.msra.mxu0 0.0
    %855 = vmatprep.subr.mxu0 0.0
    %856 = vmatpush2.msra.mxu0 0.0
    %857 = vmatprep.subr.mxu0 0.0
    %858 = vmatpush2.msra.mxu0 0.0
    %859 = vmatprep.subr.mxu0 0.0
    %860 = vmatpush2.msra.mxu0 0.0
    %861 = vmatprep.subr.mxu0 0.0
    %862 = vmatpush2.msra.mxu0 0.0
    %863 = vmatprep.subr.mxu0 0.0
    %864 = vmatpush2.msra.mxu0 0.0
    %865 = vmatprep.subr.mxu0 0.0
    %866 = vmatpush2.msra.mxu0 0.0
    %867 = vmatprep.subr.mxu0 0.0
    %868 = vmatpush2.msra.mxu0 0.0
    %869 = vmatprep.subr.mxu0 0.0
    %870 = vmatpush2.msra.mxu0 0.0
    %871 = vmatprep.subr.mxu0 0.0
    %872 = vmatpush2.msra.mxu0 0.0
    %873 = vmatprep.subr.mxu0 0.0
    %874 = vmatpush2.msra.mxu0 0.0
    %875 = vmatprep.subr.mxu0 0.0
    %876 = vmatpush2.msra.mxu0 0.0
    %877 = vmatprep.subr.mxu0 0.0
    %878 = vmatpush2.msra.mxu0 0.0
    %879 = vmatprep.subr.mxu0 0.0
    %880 = vmatpush2.msra.mxu0 0.0
    %881 = vmatprep.mubr.f32.mxu0 0.0
    %v882 = vand.u32 %v109, 4294901760
    %883 = vmatmul.mubr.f32.gmra.mxu0 %v882
    %v884 = vpop.f32.mrf.mxu0
    %v885 = vadd.f32 %v784, %v884
    %v886 = vpop.f32.mrf.mxu0
    %887 = vdwg.mxu0
    %888 = vmatprep.subr.mxu0 0.0
    %889 = vmatpush1.msra.mxu0 0.0
    %890 = vmatprep.subr.mxu0 0.0
    %891 = vmatpush1.msra.mxu0 0.0
    %892 = vmatprep.subr.mxu0 0.0
    %893 = vmatpush1.msra.mxu0 0.0
    %894 = vmatprep.subr.mxu0 0.0
    %895 = vmatpush1.msra.mxu0 0.0
    %896 = vmatprep.subr.mxu0 0.0
    %897 = vmatpush1.msra.mxu0 0.0
    %898 = vmatprep.subr.mxu0 0.0
    %899 = vmatpush1.msra.mxu0 0.0
    %900 = vmatprep.subr.mxu0 0.0
    %901 = vmatpush1.msra.mxu0 0.0
    %902 = vmatprep.subr.mxu0 0.0
    %903 = vmatpush1.msra.mxu0 0.0
    %904 = vmatprep.subr.mxu0 0.0
    %905 = vmatpush1.msra.mxu0 0.0
    %906 = vmatprep.subr.mxu0 0.0
    %907 = vmatpush1.msra.mxu0 0.0
    %908 = vmatprep.subr.mxu0 0.0
    %v909 = vand.u32 %v106, 4294901760
    %v910 = vsub.f32 %v106, %v909
    %911 = vmatpush1.msra.mxu0 %v910
    %912 = vmatprep.subr.mxu0 0.0
    %v913 = vand.u32 %v103, 4294901760
    %v914 = vsub.f32 %v103, %v913
    %915 = vmatpush1.msra.mxu0 %v914
    %916 = vmatprep.subr.mxu0 0.0
    %v917 = vand.u32 %v100, 4294901760
    %v918 = vsub.f32 %v100, %v917
    %919 = vmatpush1.msra.mxu0 %v918
    %920 = vmatprep.subr.mxu0 0.0
    %v921 = vand.u32 %v97, 4294901760
    %v922 = vsub.f32 %v97, %v921
    %923 = vmatpush1.msra.mxu0 %v922
    %924 = vmatprep.subr.mxu0 0.0
    %v925 = vand.u32 %v94, 4294901760
    %v926 = vsub.f32 %v94, %v925
    %927 = vmatpush1.msra.mxu0 %v926
    %928 = vmatprep.subr.mxu0 0.0
    %v929 = vand.u32 %v91, 4294901760
    %v930 = vsub.f32 %v91, %v929
    %931 = vmatpush1.msra.mxu0 %v930
    %932 = vmatprep.subr.mxu0 0.0
    %933 = vmatpush2.msra.mxu0 0.0
    %934 = vmatprep.subr.mxu0 0.0
    %935 = vmatpush2.msra.mxu0 0.0
    %936 = vmatprep.subr.mxu0 0.0
    %937 = vmatpush2.msra.mxu0 0.0
    %938 = vmatprep.subr.mxu0 0.0
    %939 = vmatpush2.msra.mxu0 0.0
    %940 = vmatprep.subr.mxu0 0.0
    %941 = vmatpush2.msra.mxu0 0.0
    %942 = vmatprep.subr.mxu0 0.0
    %943 = vmatpush2.msra.mxu0 0.0
    %944 = vmatprep.subr.mxu0 0.0
    %945 = vmatpush2.msra.mxu0 0.0
    %946 = vmatprep.subr.mxu0 0.0
    %947 = vmatpush2.msra.mxu0 0.0
    %948 = vmatprep.subr.mxu0 0.0
    %949 = vmatpush2.msra.mxu0 0.0
    %950 = vmatprep.subr.mxu0 0.0
    %951 = vmatpush2.msra.mxu0 0.0
    %952 = vmatprep.subr.mxu0 0.0
    %953 = vmatpush2.msra.mxu0 0.0
    %954 = vmatprep.subr.mxu0 0.0
    %955 = vmatpush2.msra.mxu0 0.0
    %956 = vmatprep.subr.mxu0 0.0
    %957 = vmatpush2.msra.mxu0 0.0
    %958 = vmatprep.subr.mxu0 0.0
    %959 = vmatpush2.msra.mxu0 0.0
    %960 = vmatprep.subr.mxu0 0.0
    %961 = vmatpush2.msra.mxu0 0.0
    %962 = vmatprep.subr.mxu0 0.0
    %963 = vmatpush2.msra.mxu0 0.0
    %964 = vmatprep.mubr.f32.mxu0 0.0
    %v965 = vand.u32 %v109, 4294901760
    %v966 = vsub.f32 %v109, %v965
    %967 = vmatmul.mubr.f32.gmra.mxu0 %v966
    %v968 = vpop.f32.mrf.mxu0
    %v969 = vadd.f32 %v885, %v968
    %v970 = vpop.f32.mrf.mxu0
    %971 = vdwg.mxu0
    %972 = vmatprep.subr.mxu0 0.0
    %973 = vmatpush1.msra.mxu0 0.0
    %974 = vmatprep.subr.mxu0 0.0
    %975 = vmatpush1.msra.mxu0 0.0
    %976 = vmatprep.subr.mxu0 0.0
    %977 = vmatpush1.msra.mxu0 0.0
    %978 = vmatprep.subr.mxu0 0.0
    %979 = vmatpush1.msra.mxu0 0.0
    %980 = vmatprep.subr.mxu0 0.0
    %981 = vmatpush1.msra.mxu0 0.0
    %982 = vmatprep.subr.mxu0 0.0
    %983 = vmatpush1.msra.mxu0 0.0
    %984 = vmatprep.subr.mxu0 0.0
    %985 = vmatpush1.msra.mxu0 0.0
    %986 = vmatprep.subr.mxu0 0.0
    %987 = vmatpush1.msra.mxu0 0.0
    %988 = vmatprep.subr.mxu0 0.0
    %989 = vmatpush1.msra.mxu0 0.0
    %990 = vmatprep.subr.mxu0 0.0
    %991 = vmatpush1.msra.mxu0 0.0
    %992 = vmatprep.subr.mxu0 0.0
    %v993 = vand.u32 %v106, 4294901760
    %994 = vmatpush1.msra.mxu0 %v993
    %995 = vmatprep.subr.mxu0 0.0
    %v996 = vand.u32 %v103, 4294901760
    %997 = vmatpush1.msra.mxu0 %v996
    %998 = vmatprep.subr.mxu0 0.0
    %v999 = vand.u32 %v100, 4294901760
    %1000 = vmatpush1.msra.mxu0 %v999
    %1001 = vmatprep.subr.mxu0 0.0
    %v1002 = vand.u32 %v97, 4294901760
    %1003 = vmatpush1.msra.mxu0 %v1002
    %1004 = vmatprep.subr.mxu0 0.0
    %v1005 = vand.u32 %v94, 4294901760
    %1006 = vmatpush1.msra.mxu0 %v1005
    %1007 = vmatprep.subr.mxu0 0.0
    %v1008 = vand.u32 %v91, 4294901760
    %1009 = vmatpush1.msra.mxu0 %v1008
    %1010 = vmatprep.subr.mxu0 0.0
    %1011 = vmatpush2.msra.mxu0 0.0
    %1012 = vmatprep.subr.mxu0 0.0
    %1013 = vmatpush2.msra.mxu0 0.0
    %1014 = vmatprep.subr.mxu0 0.0
    %1015 = vmatpush2.msra.mxu0 0.0
    %1016 = vmatprep.subr.mxu0 0.0
    %1017 = vmatpush2.msra.mxu0 0.0
    %1018 = vmatprep.subr.mxu0 0.0
    %1019 = vmatpush2.msra.mxu0 0.0
    %1020 = vmatprep.subr.mxu0 0.0
    %1021 = vmatpush2.msra.mxu0 0.0
    %1022 = vmatprep.subr.mxu0 0.0
    %1023 = vmatpush2.msra.mxu0 0.0
    %1024 = vmatprep.subr.mxu0 0.0
    %1025 = vmatpush2.msra.mxu0 0.0
    %1026 = vmatprep.subr.mxu0 0.0
    %1027 = vmatpush2.msra.mxu0 0.0
    %1028 = vmatprep.subr.mxu0 0.0
    %1029 = vmatpush2.msra.mxu0 0.0
    %1030 = vmatprep.subr.mxu0 0.0
    %1031 = vmatpush2.msra.mxu0 0.0
    %1032 = vmatprep.subr.mxu0 0.0
    %1033 = vmatpush2.msra.mxu0 0.0
    %1034 = vmatprep.subr.mxu0 0.0
    %1035 = vmatpush2.msra.mxu0 0.0
    %1036 = vmatprep.subr.mxu0 0.0
    %1037 = vmatpush2.msra.mxu0 0.0
    %1038 = vmatprep.subr.mxu0 0.0
    %1039 = vmatpush2.msra.mxu0 0.0
    %1040 = vmatprep.subr.mxu0 0.0
    %1041 = vmatpush2.msra.mxu0 0.0
    %1042 = vmatprep.mubr.f32.mxu0 0.0
    %v1043 = vand.u32 %v109, 4294901760
    %v1044 = vsub.f32 %v109, %v1043
    %v1045 = vand.u32 %v1044, 4294901760
    %1046 = vmatmul.mubr.f32.gmra.mxu0 %v1045
    %v1047 = vpop.f32.mrf.mxu0
    %v1048 = vadd.f32 %v969, %v1047
    %v1049 = vpop.f32.mrf.mxu0
    %1050 = vdwg.mxu0
    %1051 = vmatprep.subr.mxu0 0.0
    %1052 = vmatpush1.msra.mxu0 0.0
    %1053 = vmatprep.subr.mxu0 0.0
    %1054 = vmatpush1.msra.mxu0 0.0
    %1055 = vmatprep.subr.mxu0 0.0
    %1056 = vmatpush1.msra.mxu0 0.0
    %1057 = vmatprep.subr.mxu0 0.0
    %1058 = vmatpush1.msra.mxu0 0.0
    %1059 = vmatprep.subr.mxu0 0.0
    %1060 = vmatpush1.msra.mxu0 0.0
    %1061 = vmatprep.subr.mxu0 0.0
    %1062 = vmatpush1.msra.mxu0 0.0
    %1063 = vmatprep.subr.mxu0 0.0
    %1064 = vmatpush1.msra.mxu0 0.0
    %1065 = vmatprep.subr.mxu0 0.0
    %1066 = vmatpush1.msra.mxu0 0.0
    %1067 = vmatprep.subr.mxu0 0.0
    %1068 = vmatpush1.msra.mxu0 0.0
    %1069 = vmatprep.subr.mxu0 0.0
    %1070 = vmatpush1.msra.mxu0 0.0
    %1071 = vmatprep.subr.mxu0 0.0
    %v1072 = vand.u32 %v106, 4294901760
    %v1073 = vsub.f32 %v106, %v1072
    %v1074 = vand.u32 %v1073, 4294901760
    %1075 = vmatpush1.msra.mxu0 %v1074
    %1076 = vmatprep.subr.mxu0 0.0
    %v1077 = vand.u32 %v103, 4294901760
    %v1078 = vsub.f32 %v103, %v1077
    %v1079 = vand.u32 %v1078, 4294901760
    %1080 = vmatpush1.msra.mxu0 %v1079
    %1081 = vmatprep.subr.mxu0 0.0
    %v1082 = vand.u32 %v100, 4294901760
    %v1083 = vsub.f32 %v100, %v1082
    %v1084 = vand.u32 %v1083, 4294901760
    %1085 = vmatpush1.msra.mxu0 %v1084
    %1086 = vmatprep.subr.mxu0 0.0
    %v1087 = vand.u32 %v97, 4294901760
    %v1088 = vsub.f32 %v97, %v1087
    %v1089 = vand.u32 %v1088, 4294901760
    %1090 = vmatpush1.msra.mxu0 %v1089
    %1091 = vmatprep.subr.mxu0 0.0
    %v1092 = vand.u32 %v94, 4294901760
    %v1093 = vsub.f32 %v94, %v1092
    %v1094 = vand.u32 %v1093, 4294901760
    %1095 = vmatpush1.msra.mxu0 %v1094
    %1096 = vmatprep.subr.mxu0 0.0
    %v1097 = vand.u32 %v91, 4294901760
    %v1098 = vsub.f32 %v91, %v1097
    %v1099 = vand.u32 %v1098, 4294901760
    %1100 = vmatpush1.msra.mxu0 %v1099
    %1101 = vmatprep.subr.mxu0 0.0
    %1102 = vmatpush2.msra.mxu0 0.0
    %1103 = vmatprep.subr.mxu0 0.0
    %1104 = vmatpush2.msra.mxu0 0.0
    %1105 = vmatprep.subr.mxu0 0.0
    %1106 = vmatpush2.msra.mxu0 0.0
    %1107 = vmatprep.subr.mxu0 0.0
    %1108 = vmatpush2.msra.mxu0 0.0
    %1109 = vmatprep.subr.mxu0 0.0
    %1110 = vmatpush2.msra.mxu0 0.0
    %1111 = vmatprep.subr.mxu0 0.0
    %1112 = vmatpush2.msra.mxu0 0.0
    %1113 = vmatprep.subr.mxu0 0.0
    %1114 = vmatpush2.msra.mxu0 0.0
    %1115 = vmatprep.subr.mxu0 0.0
    %1116 = vmatpush2.msra.mxu0 0.0
    %1117 = vmatprep.subr.mxu0 0.0
    %1118 = vmatpush2.msra.mxu0 0.0
    %1119 = vmatprep.subr.mxu0 0.0
    %1120 = vmatpush2.msra.mxu0 0.0
    %1121 = vmatprep.subr.mxu0 0.0
    %1122 = vmatpush2.msra.mxu0 0.0
    %1123 = vmatprep.subr.mxu0 0.0
    %1124 = vmatpush2.msra.mxu0 0.0
    %1125 = vmatprep.subr.mxu0 0.0
    %1126 = vmatpush2.msra.mxu0 0.0
    %1127 = vmatprep.subr.mxu0 0.0
    %1128 = vmatpush2.msra.mxu0 0.0
    %1129 = vmatprep.subr.mxu0 0.0
    %1130 = vmatpush2.msra.mxu0 0.0
    %1131 = vmatprep.subr.mxu0 0.0
    %1132 = vmatpush2.msra.mxu0 0.0
    %1133 = vmatprep.mubr.f32.mxu0 0.0
    %v1134 = vand.u32 %v109, 4294901760
    %1135 = vmatmul.mubr.f32.gmra.mxu0 %v1134
    %v1136 = vpop.f32.mrf.mxu0
    %v1137 = vadd.f32 %v1048, %v1136
    %v1138 = vpop.f32.mrf.mxu0
    %1139 = vdwg.mxu0
    %1140 = vmatprep.subr.mxu0 0.0
    %1141 = vmatpush1.msra.mxu0 0.0
    %1142 = vmatprep.subr.mxu0 0.0
    %1143 = vmatpush1.msra.mxu0 0.0
    %1144 = vmatprep.subr.mxu0 0.0
    %1145 = vmatpush1.msra.mxu0 0.0
    %1146 = vmatprep.subr.mxu0 0.0
    %1147 = vmatpush1.msra.mxu0 0.0
    %1148 = vmatprep.subr.mxu0 0.0
    %1149 = vmatpush1.msra.mxu0 0.0
    %1150 = vmatprep.subr.mxu0 0.0
    %1151 = vmatpush1.msra.mxu0 0.0
    %1152 = vmatprep.subr.mxu0 0.0
    %1153 = vmatpush1.msra.mxu0 0.0
    %1154 = vmatprep.subr.mxu0 0.0
    %1155 = vmatpush1.msra.mxu0 0.0
    %1156 = vmatprep.subr.mxu0 0.0
    %1157 = vmatpush1.msra.mxu0 0.0
    %1158 = vmatprep.subr.mxu0 0.0
    %1159 = vmatpush1.msra.mxu0 0.0
    %1160 = vmatprep.subr.mxu0 0.0
    %v1161 = vand.u32 %v106, 4294901760
    %1162 = vmatpush1.msra.mxu0 %v1161
    %1163 = vmatprep.subr.mxu0 0.0
    %v1164 = vand.u32 %v103, 4294901760
    %1165 = vmatpush1.msra.mxu0 %v1164
    %1166 = vmatprep.subr.mxu0 0.0
    %v1167 = vand.u32 %v100, 4294901760
    %1168 = vmatpush1.msra.mxu0 %v1167
    %1169 = vmatprep.subr.mxu0 0.0
    %v1170 = vand.u32 %v97, 4294901760
    %1171 = vmatpush1.msra.mxu0 %v1170
    %1172 = vmatprep.subr.mxu0 0.0
    %v1173 = vand.u32 %v94, 4294901760
    %1174 = vmatpush1.msra.mxu0 %v1173
    %1175 = vmatprep.subr.mxu0 0.0
    %v1176 = vand.u32 %v91, 4294901760
    %1177 = vmatpush1.msra.mxu0 %v1176
    %1178 = vmatprep.subr.mxu0 0.0
    %1179 = vmatpush2.msra.mxu0 0.0
    %1180 = vmatprep.subr.mxu0 0.0
    %1181 = vmatpush2.msra.mxu0 0.0
    %1182 = vmatprep.subr.mxu0 0.0
    %1183 = vmatpush2.msra.mxu0 0.0
    %1184 = vmatprep.subr.mxu0 0.0
    %1185 = vmatpush2.msra.mxu0 0.0
    %1186 = vmatprep.subr.mxu0 0.0
    %1187 = vmatpush2.msra.mxu0 0.0
    %1188 = vmatprep.subr.mxu0 0.0
    %1189 = vmatpush2.msra.mxu0 0.0
    %1190 = vmatprep.subr.mxu0 0.0
    %1191 = vmatpush2.msra.mxu0 0.0
    %1192 = vmatprep.subr.mxu0 0.0
    %1193 = vmatpush2.msra.mxu0 0.0
    %1194 = vmatprep.subr.mxu0 0.0
    %1195 = vmatpush2.msra.mxu0 0.0
    %1196 = vmatprep.subr.mxu0 0.0
    %1197 = vmatpush2.msra.mxu0 0.0
    %1198 = vmatprep.subr.mxu0 0.0
    %1199 = vmatpush2.msra.mxu0 0.0
    %1200 = vmatprep.subr.mxu0 0.0
    %1201 = vmatpush2.msra.mxu0 0.0
    %1202 = vmatprep.subr.mxu0 0.0
    %1203 = vmatpush2.msra.mxu0 0.0
    %1204 = vmatprep.subr.mxu0 0.0
    %1205 = vmatpush2.msra.mxu0 0.0
    %1206 = vmatprep.subr.mxu0 0.0
    %1207 = vmatpush2.msra.mxu0 0.0
    %1208 = vmatprep.subr.mxu0 0.0
    %1209 = vmatpush2.msra.mxu0 0.0
    %1210 = vmatprep.mubr.f32.mxu0 0.0
    %v1211 = vand.u32 %v109, 4294901760
    %1212 = vmatmul.mubr.f32.gmra.mxu0 %v1211
    %v1213 = vpop.f32.mrf.mxu0
    %v1214 = vadd.f32 %v1137, %v1213
    %v1215 = vpop.f32.mrf.mxu0
    %1216 = vdwg.mxu0
    %v1218 = vsel %vm107, %v69, 0
    %1220 = vmatprep.subr.mxu0 0.0
    %1221 = vmatpush1.msra.mxu0 0.0
    %1222 = vmatprep.subr.mxu0 0.0
    %1223 = vmatpush1.msra.mxu0 0.0
    %1224 = vmatprep.subr.mxu0 0.0
    %1225 = vmatpush1.msra.mxu0 0.0
    %1226 = vmatprep.subr.mxu0 0.0
    %1227 = vmatpush1.msra.mxu0 0.0
    %1228 = vmatprep.subr.mxu0 0.0
    %1229 = vmatpush1.msra.mxu0 0.0
    %1230 = vmatprep.subr.mxu0 0.0
    %1231 = vmatpush1.msra.mxu0 0.0
    %1232 = vmatprep.subr.mxu0 0.0
    %1233 = vmatpush1.msra.mxu0 0.0
    %1234 = vmatprep.subr.mxu0 0.0
    %1235 = vmatpush1.msra.mxu0 0.0
    %1236 = vmatprep.subr.mxu0 0.0
    %1237 = vmatpush1.msra.mxu0 0.0
    %1238 = vmatprep.subr.mxu0 0.0
    %1239 = vmatpush1.msra.mxu0 0.0
    %v1240 = vand.u32 %v87, 4294901760
    %1241 = vmatprep.subr.mxu0 %v1240
    %v1242 = vand.u32 %v86, 4294901760
    %1243 = vmatpush1.msra.mxu0 %v1242
    %v1244 = vand.u32 %v84, 4294901760
    %1245 = vmatprep.subr.mxu0 %v1244
    %v1246 = vand.u32 %v83, 4294901760
    %1247 = vmatpush1.msra.mxu0 %v1246
    %v1248 = vand.u32 %v81, 4294901760
    %1249 = vmatprep.subr.mxu0 %v1248
    %v1250 = vand.u32 %v80, 4294901760
    %1251 = vmatpush1.msra.mxu0 %v1250
    %v1252 = vand.u32 %v78, 4294901760
    %1253 = vmatprep.subr.mxu0 %v1252
    %v1254 = vand.u32 %v77, 4294901760
    %1255 = vmatpush1.msra.mxu0 %v1254
    %v1256 = vand.u32 %v75, 4294901760
    %1257 = vmatprep.subr.mxu0 %v1256
    %v1258 = vand.u32 %v74, 4294901760
    %1259 = vmatpush1.msra.mxu0 %v1258
    %v1260 = vand.u32 %v72, 4294901760
    %1261 = vmatprep.subr.mxu0 %v1260
    %v1262 = vand.u32 %v71, 4294901760
    %1263 = vmatpush1.msra.mxu0 %v1262
    %1264 = vmatprep.subr.mxu0 0.0
    %1265 = vmatpush2.msra.mxu0 0.0
    %1266 = vmatprep.subr.mxu0 0.0
    %1267 = vmatpush2.msra.mxu0 0.0
    %1268 = vmatprep.subr.mxu0 0.0
    %1269 = vmatpush2.msra.mxu0 0.0
    %1270 = vmatprep.subr.mxu0 0.0
    %1271 = vmatpush2.msra.mxu0 0.0
    %1272 = vmatprep.subr.mxu0 0.0
    %1273 = vmatpush2.msra.mxu0 0.0
    %1274 = vmatprep.subr.mxu0 0.0
    %1275 = vmatpush2.msra.mxu0 0.0
    %1276 = vmatprep.subr.mxu0 0.0
    %1277 = vmatpush2.msra.mxu0 0.0
    %1278 = vmatprep.subr.mxu0 0.0
    %1279 = vmatpush2.msra.mxu0 0.0
    %1280 = vmatprep.subr.mxu0 0.0
    %1281 = vmatpush2.msra.mxu0 0.0
    %1282 = vmatprep.subr.mxu0 0.0
    %1283 = vmatpush2.msra.mxu0 0.0
    %1284 = vmatprep.subr.mxu0 0.0
    %1285 = vmatpush2.msra.mxu0 0.0
    %1286 = vmatprep.subr.mxu0 0.0
    %1287 = vmatpush2.msra.mxu0 0.0
    %1288 = vmatprep.subr.mxu0 0.0
    %1289 = vmatpush2.msra.mxu0 0.0
    %1290 = vmatprep.subr.mxu0 0.0
    %1291 = vmatpush2.msra.mxu0 0.0
    %1292 = vmatprep.subr.mxu0 0.0
    %1293 = vmatpush2.msra.mxu0 0.0
    %1294 = vmatprep.subr.mxu0 0.0
    %1295 = vmatpush2.msra.mxu0 0.0
    %1296 = vmatprep.mubr.f32.mxu0 0.0
    %v1297 = vand.u32 %v1218, 4294901760
    %v1298 = vsub.f32 %v1218, %v1297
    %v1299 = vand.u32 %v1298, 4294901760
    %v1300 = vsub.f32 %v1298, %v1299
    %v1301 = vand.u32 %v1300, 4294901760
    %1302 = vmatmul.mubr.f32.gmra.mxu0 %v1301
    %v1303 = vpop.f32.mrf.mxu0
    %v1304 = vadd.f32 %v702, %v1303
    %v1305 = vpop.f32.mrf.mxu0
    %v1306 = vadd.f32 %v704, %v1305
    %1307 = vdwg.mxu0
    %1308 = vmatprep.subr.mxu0 0.0
    %1309 = vmatpush1.msra.mxu0 0.0
    %1310 = vmatprep.subr.mxu0 0.0
    %1311 = vmatpush1.msra.mxu0 0.0
    %1312 = vmatprep.subr.mxu0 0.0
    %1313 = vmatpush1.msra.mxu0 0.0
    %1314 = vmatprep.subr.mxu0 0.0
    %1315 = vmatpush1.msra.mxu0 0.0
    %1316 = vmatprep.subr.mxu0 0.0
    %1317 = vmatpush1.msra.mxu0 0.0
    %1318 = vmatprep.subr.mxu0 0.0
    %1319 = vmatpush1.msra.mxu0 0.0
    %1320 = vmatprep.subr.mxu0 0.0
    %1321 = vmatpush1.msra.mxu0 0.0
    %1322 = vmatprep.subr.mxu0 0.0
    %1323 = vmatpush1.msra.mxu0 0.0
    %1324 = vmatprep.subr.mxu0 0.0
    %1325 = vmatpush1.msra.mxu0 0.0
    %1326 = vmatprep.subr.mxu0 0.0
    %1327 = vmatpush1.msra.mxu0 0.0
    %v1328 = vand.u32 %v87, 4294901760
    %v1329 = vsub.f32 %v87, %v1328
    %v1330 = vand.u32 %v1329, 4294901760
    %v1331 = vsub.f32 %v1329, %v1330
    %v1332 = vand.u32 %v1331, 4294901760
    %1333 = vmatprep.subr.mxu0 %v1332
    %v1334 = vand.u32 %v86, 4294901760
    %v1335 = vsub.f32 %v86, %v1334
    %v1336 = vand.u32 %v1335, 4294901760
    %v1337 = vsub.f32 %v1335, %v1336
    %v1338 = vand.u32 %v1337, 4294901760
    %1339 = vmatpush1.msra.mxu0 %v1338
    %v1340 = vand.u32 %v84, 4294901760
    %v1341 = vsub.f32 %v84, %v1340
    %v1342 = vand.u32 %v1341, 4294901760
    %v1343 = vsub.f32 %v1341, %v1342
    %v1344 = vand.u32 %v1343, 4294901760
    %1345 = vmatprep.subr.mxu0 %v1344
    %v1346 = vand.u32 %v83, 4294901760
    %v1347 = vsub.f32 %v83, %v1346
    %v1348 = vand.u32 %v1347, 4294901760
    %v1349 = vsub.f32 %v1347, %v1348
    %v1350 = vand.u32 %v1349, 4294901760
    %1351 = vmatpush1.msra.mxu0 %v1350
    %v1352 = vand.u32 %v81, 4294901760
    %v1353 = vsub.f32 %v81, %v1352
    %v1354 = vand.u32 %v1353, 4294901760
    %v1355 = vsub.f32 %v1353, %v1354
    %v1356 = vand.u32 %v1355, 4294901760
    %1357 = vmatprep.subr.mxu0 %v1356
    %v1358 = vand.u32 %v80, 4294901760
    %v1359 = vsub.f32 %v80, %v1358
    %v1360 = vand.u32 %v1359, 4294901760
    %v1361 = vsub.f32 %v1359, %v1360
    %v1362 = vand.u32 %v1361, 4294901760
    %1363 = vmatpush1.msra.mxu0 %v1362
    %v1364 = vand.u32 %v78, 4294901760
    %v1365 = vsub.f32 %v78, %v1364
    %v1366 = vand.u32 %v1365, 4294901760
    %v1367 = vsub.f32 %v1365, %v1366
    %v1368 = vand.u32 %v1367, 4294901760
    %1369 = vmatprep.subr.mxu0 %v1368
    %v1370 = vand.u32 %v77, 4294901760
    %v1371 = vsub.f32 %v77, %v1370
    %v1372 = vand.u32 %v1371, 4294901760
    %v1373 = vsub.f32 %v1371, %v1372
    %v1374 = vand.u32 %v1373, 4294901760
    %1375 = vmatpush1.msra.mxu0 %v1374
    %v1376 = vand.u32 %v75, 4294901760
    %v1377 = vsub.f32 %v75, %v1376
    %v1378 = vand.u32 %v1377, 4294901760
    %v1379 = vsub.f32 %v1377, %v1378
    %v1380 = vand.u32 %v1379, 4294901760
    %1381 = vmatprep.subr.mxu0 %v1380
    %v1382 = vand.u32 %v74, 4294901760
    %v1383 = vsub.f32 %v74, %v1382
    %v1384 = vand.u32 %v1383, 4294901760
    %v1385 = vsub.f32 %v1383, %v1384
    %v1386 = vand.u32 %v1385, 4294901760
    %1387 = vmatpush1.msra.mxu0 %v1386
    %v1388 = vand.u32 %v72, 4294901760
    %v1389 = vsub.f32 %v72, %v1388
    %v1390 = vand.u32 %v1389, 4294901760
    %v1391 = vsub.f32 %v1389, %v1390
    %v1392 = vand.u32 %v1391, 4294901760
    %1393 = vmatprep.subr.mxu0 %v1392
    %v1394 = vand.u32 %v71, 4294901760
    %v1395 = vsub.f32 %v71, %v1394
    %v1396 = vand.u32 %v1395, 4294901760
    %v1397 = vsub.f32 %v1395, %v1396
    %v1398 = vand.u32 %v1397, 4294901760
    %1399 = vmatpush1.msra.mxu0 %v1398
    %1400 = vmatprep.subr.mxu0 0.0
    %1401 = vmatpush2.msra.mxu0 0.0
    %1402 = vmatprep.subr.mxu0 0.0
    %1403 = vmatpush2.msra.mxu0 0.0
    %1404 = vmatprep.subr.mxu0 0.0
    %1405 = vmatpush2.msra.mxu0 0.0
    %1406 = vmatprep.subr.mxu0 0.0
    %1407 = vmatpush2.msra.mxu0 0.0
    %1408 = vmatprep.subr.mxu0 0.0
    %1409 = vmatpush2.msra.mxu0 0.0
    %1410 = vmatprep.subr.mxu0 0.0
    %1411 = vmatpush2.msra.mxu0 0.0
    %1412 = vmatprep.subr.mxu0 0.0
    %1413 = vmatpush2.msra.mxu0 0.0
    %1414 = vmatprep.subr.mxu0 0.0
    %1415 = vmatpush2.msra.mxu0 0.0
    %1416 = vmatprep.subr.mxu0 0.0
    %1417 = vmatpush2.msra.mxu0 0.0
    %1418 = vmatprep.subr.mxu0 0.0
    %1419 = vmatpush2.msra.mxu0 0.0
    %1420 = vmatprep.subr.mxu0 0.0
    %1421 = vmatpush2.msra.mxu0 0.0
    %1422 = vmatprep.subr.mxu0 0.0
    %1423 = vmatpush2.msra.mxu0 0.0
    %1424 = vmatprep.subr.mxu0 0.0
    %1425 = vmatpush2.msra.mxu0 0.0
    %1426 = vmatprep.subr.mxu0 0.0
    %1427 = vmatpush2.msra.mxu0 0.0
    %1428 = vmatprep.subr.mxu0 0.0
    %1429 = vmatpush2.msra.mxu0 0.0
    %1430 = vmatprep.subr.mxu0 0.0
    %1431 = vmatpush2.msra.mxu0 0.0
    %1432 = vmatprep.mubr.f32.mxu0 0.0
    %v1433 = vand.u32 %v1218, 4294901760
    %1434 = vmatmul.mubr.f32.gmra.mxu0 %v1433
    %v1435 = vpop.f32.mrf.mxu0
    %v1436 = vadd.f32 %v1304, %v1435
    %v1437 = vpop.f32.mrf.mxu0
    %v1438 = vadd.f32 %v1306, %v1437
    %1439 = vdwg.mxu0
    %1440 = vmatprep.subr.mxu0 0.0
    %1441 = vmatpush1.msra.mxu0 0.0
    %1442 = vmatprep.subr.mxu0 0.0
    %1443 = vmatpush1.msra.mxu0 0.0
    %1444 = vmatprep.subr.mxu0 0.0
    %1445 = vmatpush1.msra.mxu0 0.0
    %1446 = vmatprep.subr.mxu0 0.0
    %1447 = vmatpush1.msra.mxu0 0.0
    %1448 = vmatprep.subr.mxu0 0.0
    %1449 = vmatpush1.msra.mxu0 0.0
    %1450 = vmatprep.subr.mxu0 0.0
    %1451 = vmatpush1.msra.mxu0 0.0
    %1452 = vmatprep.subr.mxu0 0.0
    %1453 = vmatpush1.msra.mxu0 0.0
    %1454 = vmatprep.subr.mxu0 0.0
    %1455 = vmatpush1.msra.mxu0 0.0
    %1456 = vmatprep.subr.mxu0 0.0
    %1457 = vmatpush1.msra.mxu0 0.0
    %1458 = vmatprep.subr.mxu0 0.0
    %1459 = vmatpush1.msra.mxu0 0.0
    %v1460 = vand.u32 %v87, 4294901760
    %v1461 = vsub.f32 %v87, %v1460
    %1462 = vmatprep.subr.mxu0 %v1461
    %v1463 = vand.u32 %v86, 4294901760
    %v1464 = vsub.f32 %v86, %v1463
    %1465 = vmatpush1.msra.mxu0 %v1464
    %v1466 = vand.u32 %v84, 4294901760
    %v1467 = vsub.f32 %v84, %v1466
    %1468 = vmatprep.subr.mxu0 %v1467
    %v1469 = vand.u32 %v83, 4294901760
    %v1470 = vsub.f32 %v83, %v1469
    %1471 = vmatpush1.msra.mxu0 %v1470
    %v1472 = vand.u32 %v81, 4294901760
    %v1473 = vsub.f32 %v81, %v1472
    %1474 = vmatprep.subr.mxu0 %v1473
    %v1475 = vand.u32 %v80, 4294901760
    %v1476 = vsub.f32 %v80, %v1475
    %1477 = vmatpush1.msra.mxu0 %v1476
    %v1478 = vand.u32 %v78, 4294901760
    %v1479 = vsub.f32 %v78, %v1478
    %1480 = vmatprep.subr.mxu0 %v1479
    %v1481 = vand.u32 %v77, 4294901760
    %v1482 = vsub.f32 %v77, %v1481
    %1483 = vmatpush1.msra.mxu0 %v1482
    %v1484 = vand.u32 %v75, 4294901760
    %v1485 = vsub.f32 %v75, %v1484
    %1486 = vmatprep.subr.mxu0 %v1485
    %v1487 = vand.u32 %v74, 4294901760
    %v1488 = vsub.f32 %v74, %v1487
    %1489 = vmatpush1.msra.mxu0 %v1488
    %v1490 = vand.u32 %v72, 4294901760
    %v1491 = vsub.f32 %v72, %v1490
    %1492 = vmatprep.subr.mxu0 %v1491
    %v1493 = vand.u32 %v71, 4294901760
    %v1494 = vsub.f32 %v71, %v1493
    %1495 = vmatpush1.msra.mxu0 %v1494
    %1496 = vmatprep.subr.mxu0 0.0
    %1497 = vmatpush2.msra.mxu0 0.0
    %1498 = vmatprep.subr.mxu0 0.0
    %1499 = vmatpush2.msra.mxu0 0.0
    %1500 = vmatprep.subr.mxu0 0.0
    %1501 = vmatpush2.msra.mxu0 0.0
    %1502 = vmatprep.subr.mxu0 0.0
    %1503 = vmatpush2.msra.mxu0 0.0
    %1504 = vmatprep.subr.mxu0 0.0
    %1505 = vmatpush2.msra.mxu0 0.0
    %1506 = vmatprep.subr.mxu0 0.0
    %1507 = vmatpush2.msra.mxu0 0.0
    %1508 = vmatprep.subr.mxu0 0.0
    %1509 = vmatpush2.msra.mxu0 0.0
    %1510 = vmatprep.subr.mxu0 0.0
    %1511 = vmatpush2.msra.mxu0 0.0
    %1512 = vmatprep.subr.mxu0 0.0
    %1513 = vmatpush2.msra.mxu0 0.0
    %1514 = vmatprep.subr.mxu0 0.0
    %1515 = vmatpush2.msra.mxu0 0.0
    %1516 = vmatprep.subr.mxu0 0.0
    %1517 = vmatpush2.msra.mxu0 0.0
    %1518 = vmatprep.subr.mxu0 0.0
    %1519 = vmatpush2.msra.mxu0 0.0
    %1520 = vmatprep.subr.mxu0 0.0
    %1521 = vmatpush2.msra.mxu0 0.0
    %1522 = vmatprep.subr.mxu0 0.0
    %1523 = vmatpush2.msra.mxu0 0.0
    %1524 = vmatprep.subr.mxu0 0.0
    %1525 = vmatpush2.msra.mxu0 0.0
    %1526 = vmatprep.subr.mxu0 0.0
    %1527 = vmatpush2.msra.mxu0 0.0
    %1528 = vmatprep.mubr.f32.mxu0 0.0
    %v1529 = vand.u32 %v1218, 4294901760
    %v1530 = vsub.f32 %v1218, %v1529
    %1531 = vmatmul.mubr.f32.gmra.mxu0 %v1530
    %v1532 = vpop.f32.mrf.mxu0
    %v1533 = vadd.f32 %v1436, %v1532
    %v1534 = vpop.f32.mrf.mxu0
    %v1535 = vadd.f32 %v1438, %v1534
    %1536 = vdwg.mxu0
    %1537 = vmatprep.subr.mxu0 0.0
    %1538 = vmatpush1.msra.mxu0 0.0
    %1539 = vmatprep.subr.mxu0 0.0
    %1540 = vmatpush1.msra.mxu0 0.0
    %1541 = vmatprep.subr.mxu0 0.0
    %1542 = vmatpush1.msra.mxu0 0.0
    %1543 = vmatprep.subr.mxu0 0.0
    %1544 = vmatpush1.msra.mxu0 0.0
    %1545 = vmatprep.subr.mxu0 0.0
    %1546 = vmatpush1.msra.mxu0 0.0
    %1547 = vmatprep.subr.mxu0 0.0
    %1548 = vmatpush1.msra.mxu0 0.0
    %1549 = vmatprep.subr.mxu0 0.0
    %1550 = vmatpush1.msra.mxu0 0.0
    %1551 = vmatprep.subr.mxu0 0.0
    %1552 = vmatpush1.msra.mxu0 0.0
    %1553 = vmatprep.subr.mxu0 0.0
    %1554 = vmatpush1.msra.mxu0 0.0
    %1555 = vmatprep.subr.mxu0 0.0
    %1556 = vmatpush1.msra.mxu0 0.0
    %v1557 = vand.u32 %v87, 4294901760
    %1558 = vmatprep.subr.mxu0 %v1557
    %v1559 = vand.u32 %v86, 4294901760
    %1560 = vmatpush1.msra.mxu0 %v1559
    %v1561 = vand.u32 %v84, 4294901760
    %1562 = vmatprep.subr.mxu0 %v1561
    %v1563 = vand.u32 %v83, 4294901760
    %1564 = vmatpush1.msra.mxu0 %v1563
    %v1565 = vand.u32 %v81, 4294901760
    %1566 = vmatprep.subr.mxu0 %v1565
    %v1567 = vand.u32 %v80, 4294901760
    %1568 = vmatpush1.msra.mxu0 %v1567
    %v1569 = vand.u32 %v78, 4294901760
    %1570 = vmatprep.subr.mxu0 %v1569
    %v1571 = vand.u32 %v77, 4294901760
    %1572 = vmatpush1.msra.mxu0 %v1571
    %v1573 = vand.u32 %v75, 4294901760
    %1574 = vmatprep.subr.mxu0 %v1573
    %v1575 = vand.u32 %v74, 4294901760
    %1576 = vmatpush1.msra.mxu0 %v1575
    %v1577 = vand.u32 %v72, 4294901760
    %1578 = vmatprep.subr.mxu0 %v1577
    %v1579 = vand.u32 %v71, 4294901760
    %1580 = vmatpush1.msra.mxu0 %v1579
    %1581 = vmatprep.subr.mxu0 0.0
    %1582 = vmatpush2.msra.mxu0 0.0
    %1583 = vmatprep.subr.mxu0 0.0
    %1584 = vmatpush2.msra.mxu0 0.0
    %1585 = vmatprep.subr.mxu0 0.0
    %1586 = vmatpush2.msra.mxu0 0.0
    %1587 = vmatprep.subr.mxu0 0.0
    %1588 = vmatpush2.msra.mxu0 0.0
    %1589 = vmatprep.subr.mxu0 0.0
    %1590 = vmatpush2.msra.mxu0 0.0
    %1591 = vmatprep.subr.mxu0 0.0
    %1592 = vmatpush2.msra.mxu0 0.0
    %1593 = vmatprep.subr.mxu0 0.0
    %1594 = vmatpush2.msra.mxu0 0.0
    %1595 = vmatprep.subr.mxu0 0.0
    %1596 = vmatpush2.msra.mxu0 0.0
    %1597 = vmatprep.subr.mxu0 0.0
    %1598 = vmatpush2.msra.mxu0 0.0
    %1599 = vmatprep.subr.mxu0 0.0
    %1600 = vmatpush2.msra.mxu0 0.0
    %1601 = vmatprep.subr.mxu0 0.0
    %1602 = vmatpush2.msra.mxu0 0.0
    %1603 = vmatprep.subr.mxu0 0.0
    %1604 = vmatpush2.msra.mxu0 0.0
    %1605 = vmatprep.subr.mxu0 0.0
    %1606 = vmatpush2.msra.mxu0 0.0
    %1607 = vmatprep.subr.mxu0 0.0
    %1608 = vmatpush2.msra.mxu0 0.0
    %1609 = vmatprep.subr.mxu0 0.0
    %1610 = vmatpush2.msra.mxu0 0.0
    %1611 = vmatprep.subr.mxu0 0.0
    %1612 = vmatpush2.msra.mxu0 0.0
    %1613 = vmatprep.mubr.f32.mxu0 0.0
    %v1614 = vand.u32 %v1218, 4294901760
    %v1615 = vsub.f32 %v1218, %v1614
    %v1616 = vand.u32 %v1615, 4294901760
    %1617 = vmatmul.mubr.f32.gmra.mxu0 %v1616
    %v1618 = vpop.f32.mrf.mxu0
    %v1619 = vadd.f32 %v1533, %v1618
    %v1620 = vpop.f32.mrf.mxu0
    %v1621 = vadd.f32 %v1535, %v1620
    %1622 = vdwg.mxu0
    %1623 = vmatprep.subr.mxu0 0.0
    %1624 = vmatpush1.msra.mxu0 0.0
    %1625 = vmatprep.subr.mxu0 0.0
    %1626 = vmatpush1.msra.mxu0 0.0
    %1627 = vmatprep.subr.mxu0 0.0
    %1628 = vmatpush1.msra.mxu0 0.0
    %1629 = vmatprep.subr.mxu0 0.0
    %1630 = vmatpush1.msra.mxu0 0.0
    %1631 = vmatprep.subr.mxu0 0.0
    %1632 = vmatpush1.msra.mxu0 0.0
    %1633 = vmatprep.subr.mxu0 0.0
    %1634 = vmatpush1.msra.mxu0 0.0
    %1635 = vmatprep.subr.mxu0 0.0
    %1636 = vmatpush1.msra.mxu0 0.0
    %1637 = vmatprep.subr.mxu0 0.0
    %1638 = vmatpush1.msra.mxu0 0.0
    %1639 = vmatprep.subr.mxu0 0.0
    %1640 = vmatpush1.msra.mxu0 0.0
    %1641 = vmatprep.subr.mxu0 0.0
    %1642 = vmatpush1.msra.mxu0 0.0
    %v1643 = vand.u32 %v87, 4294901760
    %v1644 = vsub.f32 %v87, %v1643
    %v1645 = vand.u32 %v1644, 4294901760
    %1646 = vmatprep.subr.mxu0 %v1645
    %v1647 = vand.u32 %v86, 4294901760
    %v1648 = vsub.f32 %v86, %v1647
    %v1649 = vand.u32 %v1648, 4294901760
    %1650 = vmatpush1.msra.mxu0 %v1649
    %v1651 = vand.u32 %v84, 4294901760
    %v1652 = vsub.f32 %v84, %v1651
    %v1653 = vand.u32 %v1652, 4294901760
    %1654 = vmatprep.subr.mxu0 %v1653
    %v1655 = vand.u32 %v83, 4294901760
    %v1656 = vsub.f32 %v83, %v1655
    %v1657 = vand.u32 %v1656, 4294901760
    %1658 = vmatpush1.msra.mxu0 %v1657
    %v1659 = vand.u32 %v81, 4294901760
    %v1660 = vsub.f32 %v81, %v1659
    %v1661 = vand.u32 %v1660, 4294901760
    %1662 = vmatprep.subr.mxu0 %v1661
    %v1663 = vand.u32 %v80, 4294901760
    %v1664 = vsub.f32 %v80, %v1663
    %v1665 = vand.u32 %v1664, 4294901760
    %1666 = vmatpush1.msra.mxu0 %v1665
    %v1667 = vand.u32 %v78, 4294901760
    %v1668 = vsub.f32 %v78, %v1667
    %v1669 = vand.u32 %v1668, 4294901760
    %1670 = vmatprep.subr.mxu0 %v1669
    %v1671 = vand.u32 %v77, 4294901760
    %v1672 = vsub.f32 %v77, %v1671
    %v1673 = vand.u32 %v1672, 4294901760
    %1674 = vmatpush1.msra.mxu0 %v1673
    %v1675 = vand.u32 %v75, 4294901760
    %v1676 = vsub.f32 %v75, %v1675
    %v1677 = vand.u32 %v1676, 4294901760
    %1678 = vmatprep.subr.mxu0 %v1677
    %v1679 = vand.u32 %v74, 4294901760
    %v1680 = vsub.f32 %v74, %v1679
    %v1681 = vand.u32 %v1680, 4294901760
    %1682 = vmatpush1.msra.mxu0 %v1681
    %v1683 = vand.u32 %v72, 4294901760
    %v1684 = vsub.f32 %v72, %v1683
    %v1685 = vand.u32 %v1684, 4294901760
    %1686 = vmatprep.subr.mxu0 %v1685
    %v1687 = vand.u32 %v71, 4294901760
    %v1688 = vsub.f32 %v71, %v1687
    %v1689 = vand.u32 %v1688, 4294901760
    %1690 = vmatpush1.msra.mxu0 %v1689
    %1691 = vmatprep.subr.mxu0 0.0
    %1692 = vmatpush2.msra.mxu0 0.0
    %1693 = vmatprep.subr.mxu0 0.0
    %1694 = vmatpush2.msra.mxu0 0.0
    %1695 = vmatprep.subr.mxu0 0.0
    %1696 = vmatpush2.msra.mxu0 0.0
    %1697 = vmatprep.subr.mxu0 0.0
    %1698 = vmatpush2.msra.mxu0 0.0
    %1699 = vmatprep.subr.mxu0 0.0
    %1700 = vmatpush2.msra.mxu0 0.0
    %1701 = vmatprep.subr.mxu0 0.0
    %1702 = vmatpush2.msra.mxu0 0.0
    %1703 = vmatprep.subr.mxu0 0.0
    %1704 = vmatpush2.msra.mxu0 0.0
    %1705 = vmatprep.subr.mxu0 0.0
    %1706 = vmatpush2.msra.mxu0 0.0
    %1707 = vmatprep.subr.mxu0 0.0
    %1708 = vmatpush2.msra.mxu0 0.0
    %1709 = vmatprep.subr.mxu0 0.0
    %1710 = vmatpush2.msra.mxu0 0.0
    %1711 = vmatprep.subr.mxu0 0.0
    %1712 = vmatpush2.msra.mxu0 0.0
    %1713 = vmatprep.subr.mxu0 0.0
    %1714 = vmatpush2.msra.mxu0 0.0
    %1715 = vmatprep.subr.mxu0 0.0
    %1716 = vmatpush2.msra.mxu0 0.0
    %1717 = vmatprep.subr.mxu0 0.0
    %1718 = vmatpush2.msra.mxu0 0.0
    %1719 = vmatprep.subr.mxu0 0.0
    %1720 = vmatpush2.msra.mxu0 0.0
    %1721 = vmatprep.subr.mxu0 0.0
    %1722 = vmatpush2.msra.mxu0 0.0
    %1723 = vmatprep.mubr.f32.mxu0 0.0
    %v1724 = vand.u32 %v1218, 4294901760
    %1725 = vmatmul.mubr.f32.gmra.mxu0 %v1724
    %v1726 = vpop.f32.mrf.mxu0
    %v1727 = vadd.f32 %v1619, %v1726
    %v1728 = vpop.f32.mrf.mxu0
    %v1729 = vadd.f32 %v1621, %v1728
    %1730 = vdwg.mxu0
    %1731 = vmatprep.subr.mxu0 0.0
    %1732 = vmatpush1.msra.mxu0 0.0
    %1733 = vmatprep.subr.mxu0 0.0
    %1734 = vmatpush1.msra.mxu0 0.0
    %1735 = vmatprep.subr.mxu0 0.0
    %1736 = vmatpush1.msra.mxu0 0.0
    %1737 = vmatprep.subr.mxu0 0.0
    %1738 = vmatpush1.msra.mxu0 0.0
    %1739 = vmatprep.subr.mxu0 0.0
    %1740 = vmatpush1.msra.mxu0 0.0
    %1741 = vmatprep.subr.mxu0 0.0
    %1742 = vmatpush1.msra.mxu0 0.0
    %1743 = vmatprep.subr.mxu0 0.0
    %1744 = vmatpush1.msra.mxu0 0.0
    %1745 = vmatprep.subr.mxu0 0.0
    %1746 = vmatpush1.msra.mxu0 0.0
    %1747 = vmatprep.subr.mxu0 0.0
    %1748 = vmatpush1.msra.mxu0 0.0
    %1749 = vmatprep.subr.mxu0 0.0
    %1750 = vmatpush1.msra.mxu0 0.0
    %v1751 = vand.u32 %v87, 4294901760
    %1752 = vmatprep.subr.mxu0 %v1751
    %v1753 = vand.u32 %v86, 4294901760
    %1754 = vmatpush1.msra.mxu0 %v1753
    %v1755 = vand.u32 %v84, 4294901760
    %1756 = vmatprep.subr.mxu0 %v1755
    %v1757 = vand.u32 %v83, 4294901760
    %1758 = vmatpush1.msra.mxu0 %v1757
    %v1759 = vand.u32 %v81, 4294901760
    %1760 = vmatprep.subr.mxu0 %v1759
    %v1761 = vand.u32 %v80, 4294901760
    %1762 = vmatpush1.msra.mxu0 %v1761
    %v1763 = vand.u32 %v78, 4294901760
    %1764 = vmatprep.subr.mxu0 %v1763
    %v1765 = vand.u32 %v77, 4294901760
    %1766 = vmatpush1.msra.mxu0 %v1765
    %v1767 = vand.u32 %v75, 4294901760
    %1768 = vmatprep.subr.mxu0 %v1767
    %v1769 = vand.u32 %v74, 4294901760
    %1770 = vmatpush1.msra.mxu0 %v1769
    %v1771 = vand.u32 %v72, 4294901760
    %1772 = vmatprep.subr.mxu0 %v1771
    %v1773 = vand.u32 %v71, 4294901760
    %1774 = vmatpush1.msra.mxu0 %v1773
    %1775 = vmatprep.subr.mxu0 0.0
    %1776 = vmatpush2.msra.mxu0 0.0
    %1777 = vmatprep.subr.mxu0 0.0
    %1778 = vmatpush2.msra.mxu0 0.0
    %1779 = vmatprep.subr.mxu0 0.0
    %1780 = vmatpush2.msra.mxu0 0.0
    %1781 = vmatprep.subr.mxu0 0.0
    %1782 = vmatpush2.msra.mxu0 0.0
    %1783 = vmatprep.subr.mxu0 0.0
    %1784 = vmatpush2.msra.mxu0 0.0
    %1785 = vmatprep.subr.mxu0 0.0
    %1786 = vmatpush2.msra.mxu0 0.0
    %1787 = vmatprep.subr.mxu0 0.0
    %1788 = vmatpush2.msra.mxu0 0.0
    %1789 = vmatprep.subr.mxu0 0.0
    %1790 = vmatpush2.msra.mxu0 0.0
    %1791 = vmatprep.subr.mxu0 0.0
    %1792 = vmatpush2.msra.mxu0 0.0
    %1793 = vmatprep.subr.mxu0 0.0
    %1794 = vmatpush2.msra.mxu0 0.0
    %1795 = vmatprep.subr.mxu0 0.0
    %1796 = vmatpush2.msra.mxu0 0.0
    %1797 = vmatprep.subr.mxu0 0.0
    %1798 = vmatpush2.msra.mxu0 0.0
    %1799 = vmatprep.subr.mxu0 0.0
    %1800 = vmatpush2.msra.mxu0 0.0
    %1801 = vmatprep.subr.mxu0 0.0
    %1802 = vmatpush2.msra.mxu0 0.0
    %1803 = vmatprep.subr.mxu0 0.0
    %1804 = vmatpush2.msra.mxu0 0.0
    %1805 = vmatprep.subr.mxu0 0.0
    %1806 = vmatpush2.msra.mxu0 0.0
    %1807 = vmatprep.mubr.f32.mxu0 0.0
    %v1808 = vand.u32 %v1218, 4294901760
    %1809 = vmatmul.mubr.f32.gmra.mxu0 %v1808
    %v1810 = vpop.f32.mrf.mxu0
    %v1811 = vadd.f32 %v1727, %v1810
    %v1812 = vpop.f32.mrf.mxu0
    %v1813 = vadd.f32 %v1729, %v1812
    %1814 = vdwg.mxu0
    %1815 = vmatprep.subr.mxu0 0.0
    %1816 = vmatpush1.msra.mxu0 0.0
    %1817 = vmatprep.subr.mxu0 0.0
    %1818 = vmatpush1.msra.mxu0 0.0
    %1819 = vmatprep.subr.mxu0 0.0
    %1820 = vmatpush1.msra.mxu0 0.0
    %1821 = vmatprep.subr.mxu0 0.0
    %1822 = vmatpush1.msra.mxu0 0.0
    %1823 = vmatprep.subr.mxu0 0.0
    %1824 = vmatpush1.msra.mxu0 0.0
    %1825 = vmatprep.subr.mxu0 0.0
    %1826 = vmatpush1.msra.mxu0 0.0
    %1827 = vmatprep.subr.mxu0 0.0
    %1828 = vmatpush1.msra.mxu0 0.0
    %1829 = vmatprep.subr.mxu0 0.0
    %1830 = vmatpush1.msra.mxu0 0.0
    %1831 = vmatprep.subr.mxu0 0.0
    %1832 = vmatpush1.msra.mxu0 0.0
    %1833 = vmatprep.subr.mxu0 0.0
    %1834 = vmatpush1.msra.mxu0 0.0
    %1835 = vmatprep.subr.mxu0 0.0
    %v1836 = vand.u32 %v88, 4294901760
    %1837 = vmatpush1.msra.mxu0 %v1836
    %1838 = vmatprep.subr.mxu0 0.0
    %v1839 = vand.u32 %v85, 4294901760
    %1840 = vmatpush1.msra.mxu0 %v1839
    %1841 = vmatprep.subr.mxu0 0.0
    %v1842 = vand.u32 %v82, 4294901760
    %1843 = vmatpush1.msra.mxu0 %v1842
    %1844 = vmatprep.subr.mxu0 0.0
    %v1845 = vand.u32 %v79, 4294901760
    %1846 = vmatpush1.msra.mxu0 %v1845
    %1847 = vmatprep.subr.mxu0 0.0
    %v1848 = vand.u32 %v76, 4294901760
    %1849 = vmatpush1.msra.mxu0 %v1848
    %1850 = vmatprep.subr.mxu0 0.0
    %v1851 = vand.u32 %v73, 4294901760
    %1852 = vmatpush1.msra.mxu0 %v1851
    %1853 = vmatprep.subr.mxu0 0.0
    %1854 = vmatpush2.msra.mxu0 0.0
    %1855 = vmatprep.subr.mxu0 0.0
    %1856 = vmatpush2.msra.mxu0 0.0
    %1857 = vmatprep.subr.mxu0 0.0
    %1858 = vmatpush2.msra.mxu0 0.0
    %1859 = vmatprep.subr.mxu0 0.0
    %1860 = vmatpush2.msra.mxu0 0.0
    %1861 = vmatprep.subr.mxu0 0.0
    %1862 = vmatpush2.msra.mxu0 0.0
    %1863 = vmatprep.subr.mxu0 0.0
    %1864 = vmatpush2.msra.mxu0 0.0
    %1865 = vmatprep.subr.mxu0 0.0
    %1866 = vmatpush2.msra.mxu0 0.0
    %1867 = vmatprep.subr.mxu0 0.0
    %1868 = vmatpush2.msra.mxu0 0.0
    %1869 = vmatprep.subr.mxu0 0.0
    %1870 = vmatpush2.msra.mxu0 0.0
    %1871 = vmatprep.subr.mxu0 0.0
    %1872 = vmatpush2.msra.mxu0 0.0
    %1873 = vmatprep.subr.mxu0 0.0
    %1874 = vmatpush2.msra.mxu0 0.0
    %1875 = vmatprep.subr.mxu0 0.0
    %1876 = vmatpush2.msra.mxu0 0.0
    %1877 = vmatprep.subr.mxu0 0.0
    %1878 = vmatpush2.msra.mxu0 0.0
    %1879 = vmatprep.subr.mxu0 0.0
    %1880 = vmatpush2.msra.mxu0 0.0
    %1881 = vmatprep.subr.mxu0 0.0
    %1882 = vmatpush2.msra.mxu0 0.0
    %1883 = vmatprep.subr.mxu0 0.0
    %1884 = vmatpush2.msra.mxu0 0.0
    %1885 = vmatprep.mubr.f32.mxu0 0.0
    %v1886 = vand.u32 %v1218, 4294901760
    %v1887 = vsub.f32 %v1218, %v1886
    %v1888 = vand.u32 %v1887, 4294901760
    %v1889 = vsub.f32 %v1887, %v1888
    %v1890 = vand.u32 %v1889, 4294901760
    %1891 = vmatmul.mubr.f32.gmra.mxu0 %v1890
    %v1892 = vpop.f32.mrf.mxu0
    %v1893 = vadd.f32 %v1214, %v1892
    %v1894 = vpop.f32.mrf.mxu0
    %1895 = vdwg.mxu0
    %1896 = vmatprep.subr.mxu0 0.0
    %1897 = vmatpush1.msra.mxu0 0.0
    %1898 = vmatprep.subr.mxu0 0.0
    %1899 = vmatpush1.msra.mxu0 0.0
    %1900 = vmatprep.subr.mxu0 0.0
    %1901 = vmatpush1.msra.mxu0 0.0
    %1902 = vmatprep.subr.mxu0 0.0
    %1903 = vmatpush1.msra.mxu0 0.0
    %1904 = vmatprep.subr.mxu0 0.0
    %1905 = vmatpush1.msra.mxu0 0.0
    %1906 = vmatprep.subr.mxu0 0.0
    %1907 = vmatpush1.msra.mxu0 0.0
    %1908 = vmatprep.subr.mxu0 0.0
    %1909 = vmatpush1.msra.mxu0 0.0
    %1910 = vmatprep.subr.mxu0 0.0
    %1911 = vmatpush1.msra.mxu0 0.0
    %1912 = vmatprep.subr.mxu0 0.0
    %1913 = vmatpush1.msra.mxu0 0.0
    %1914 = vmatprep.subr.mxu0 0.0
    %1915 = vmatpush1.msra.mxu0 0.0
    %1916 = vmatprep.subr.mxu0 0.0
    %v1917 = vand.u32 %v88, 4294901760
    %v1918 = vsub.f32 %v88, %v1917
    %v1919 = vand.u32 %v1918, 4294901760
    %v1920 = vsub.f32 %v1918, %v1919
    %v1921 = vand.u32 %v1920, 4294901760
    %1922 = vmatpush1.msra.mxu0 %v1921
    %1923 = vmatprep.subr.mxu0 0.0
    %v1924 = vand.u32 %v85, 4294901760
    %v1925 = vsub.f32 %v85, %v1924
    %v1926 = vand.u32 %v1925, 4294901760
    %v1927 = vsub.f32 %v1925, %v1926
    %v1928 = vand.u32 %v1927, 4294901760
    %1929 = vmatpush1.msra.mxu0 %v1928
    %1930 = vmatprep.subr.mxu0 0.0
    %v1931 = vand.u32 %v82, 4294901760
    %v1932 = vsub.f32 %v82, %v1931
    %v1933 = vand.u32 %v1932, 4294901760
    %v1934 = vsub.f32 %v1932, %v1933
    %v1935 = vand.u32 %v1934, 4294901760
    %1936 = vmatpush1.msra.mxu0 %v1935
    %1937 = vmatprep.subr.mxu0 0.0
    %v1938 = vand.u32 %v79, 4294901760
    %v1939 = vsub.f32 %v79, %v1938
    %v1940 = vand.u32 %v1939, 4294901760
    %v1941 = vsub.f32 %v1939, %v1940
    %v1942 = vand.u32 %v1941, 4294901760
    %1943 = vmatpush1.msra.mxu0 %v1942
    %1944 = vmatprep.subr.mxu0 0.0
    %v1945 = vand.u32 %v76, 4294901760
    %v1946 = vsub.f32 %v76, %v1945
    %v1947 = vand.u32 %v1946, 4294901760
    %v1948 = vsub.f32 %v1946, %v1947
    %v1949 = vand.u32 %v1948, 4294901760
    %1950 = vmatpush1.msra.mxu0 %v1949
    %1951 = vmatprep.subr.mxu0 0.0
    %v1952 = vand.u32 %v73, 4294901760
    %v1953 = vsub.f32 %v73, %v1952
    %v1954 = vand.u32 %v1953, 4294901760
    %v1955 = vsub.f32 %v1953, %v1954
    %v1956 = vand.u32 %v1955, 4294901760
    %1957 = vmatpush1.msra.mxu0 %v1956
    %1958 = vmatprep.subr.mxu0 0.0
    %1959 = vmatpush2.msra.mxu0 0.0
    %1960 = vmatprep.subr.mxu0 0.0
    %1961 = vmatpush2.msra.mxu0 0.0
    %1962 = vmatprep.subr.mxu0 0.0
    %1963 = vmatpush2.msra.mxu0 0.0
    %1964 = vmatprep.subr.mxu0 0.0
    %1965 = vmatpush2.msra.mxu0 0.0
    %1966 = vmatprep.subr.mxu0 0.0
    %1967 = vmatpush2.msra.mxu0 0.0
    %1968 = vmatprep.subr.mxu0 0.0
    %1969 = vmatpush2.msra.mxu0 0.0
    %1970 = vmatprep.subr.mxu0 0.0
    %1971 = vmatpush2.msra.mxu0 0.0
    %1972 = vmatprep.subr.mxu0 0.0
    %1973 = vmatpush2.msra.mxu0 0.0
    %1974 = vmatprep.subr.mxu0 0.0
    %1975 = vmatpush2.msra.mxu0 0.0
    %1976 = vmatprep.subr.mxu0 0.0
    %1977 = vmatpush2.msra.mxu0 0.0
    %1978 = vmatprep.subr.mxu0 0.0
    %1979 = vmatpush2.msra.mxu0 0.0
    %1980 = vmatprep.subr.mxu0 0.0
    %1981 = vmatpush2.msra.mxu0 0.0
    %1982 = vmatprep.subr.mxu0 0.0
    %1983 = vmatpush2.msra.mxu0 0.0
    %1984 = vmatprep.subr.mxu0 0.0
    %1985 = vmatpush2.msra.mxu0 0.0
    %1986 = vmatprep.subr.mxu0 0.0
    %1987 = vmatpush2.msra.mxu0 0.0
    %1988 = vmatprep.subr.mxu0 0.0
    %1989 = vmatpush2.msra.mxu0 0.0
    %1990 = vmatprep.mubr.f32.mxu0 0.0
    %v1991 = vand.u32 %v1218, 4294901760
    %1992 = vmatmul.mubr.f32.gmra.mxu0 %v1991
    %v1993 = vpop.f32.mrf.mxu0
    %v1994 = vadd.f32 %v1893, %v1993
    %v1995 = vpop.f32.mrf.mxu0
    %1996 = vdwg.mxu0
    %1997 = vmatprep.subr.mxu0 0.0
    %1998 = vmatpush1.msra.mxu0 0.0
    %1999 = vmatprep.subr.mxu0 0.0
    %2000 = vmatpush1.msra.mxu0 0.0
    %2001 = vmatprep.subr.mxu0 0.0
    %2002 = vmatpush1.msra.mxu0 0.0
    %2003 = vmatprep.subr.mxu0 0.0
    %2004 = vmatpush1.msra.mxu0 0.0
    %2005 = vmatprep.subr.mxu0 0.0
    %2006 = vmatpush1.msra.mxu0 0.0
    %2007 = vmatprep.subr.mxu0 0.0
    %2008 = vmatpush1.msra.mxu0 0.0
    %2009 = vmatprep.subr.mxu0 0.0
    %2010 = vmatpush1.msra.mxu0 0.0
    %2011 = vmatprep.subr.mxu0 0.0
    %2012 = vmatpush1.msra.mxu0 0.0
    %2013 = vmatprep.subr.mxu0 0.0
    %2014 = vmatpush1.msra.mxu0 0.0
    %2015 = vmatprep.subr.mxu0 0.0
    %2016 = vmatpush1.msra.mxu0 0.0
    %2017 = vmatprep.subr.mxu0 0.0
    %v2018 = vand.u32 %v88, 4294901760
    %v2019 = vsub.f32 %v88, %v2018
    %2020 = vmatpush1.msra.mxu0 %v2019
    %2021 = vmatprep.subr.mxu0 0.0
    %v2022 = vand.u32 %v85, 4294901760
    %v2023 = vsub.f32 %v85, %v2022
    %2024 = vmatpush1.msra.mxu0 %v2023
    %2025 = vmatprep.subr.mxu0 0.0
    %v2026 = vand.u32 %v82, 4294901760
    %v2027 = vsub.f32 %v82, %v2026
    %2028 = vmatpush1.msra.mxu0 %v2027
    %2029 = vmatprep.subr.mxu0 0.0
    %v2030 = vand.u32 %v79, 4294901760
    %v2031 = vsub.f32 %v79, %v2030
    %2032 = vmatpush1.msra.mxu0 %v2031
    %2033 = vmatprep.subr.mxu0 0.0
    %v2034 = vand.u32 %v76, 4294901760
    %v2035 = vsub.f32 %v76, %v2034
    %2036 = vmatpush1.msra.mxu0 %v2035
    %2037 = vmatprep.subr.mxu0 0.0
    %v2038 = vand.u32 %v73, 4294901760
    %v2039 = vsub.f32 %v73, %v2038
    %2040 = vmatpush1.msra.mxu0 %v2039
    %2041 = vmatprep.subr.mxu0 0.0
    %2042 = vmatpush2.msra.mxu0 0.0
    %2043 = vmatprep.subr.mxu0 0.0
    %2044 = vmatpush2.msra.mxu0 0.0
    %2045 = vmatprep.subr.mxu0 0.0
    %2046 = vmatpush2.msra.mxu0 0.0
    %2047 = vmatprep.subr.mxu0 0.0
    %2048 = vmatpush2.msra.mxu0 0.0
    %2049 = vmatprep.subr.mxu0 0.0
    %2050 = vmatpush2.msra.mxu0 0.0
    %2051 = vmatprep.subr.mxu0 0.0
    %2052 = vmatpush2.msra.mxu0 0.0
    %2053 = vmatprep.subr.mxu0 0.0
    %2054 = vmatpush2.msra.mxu0 0.0
    %2055 = vmatprep.subr.mxu0 0.0
    %2056 = vmatpush2.msra.mxu0 0.0
    %2057 = vmatprep.subr.mxu0 0.0
    %2058 = vmatpush2.msra.mxu0 0.0
    %2059 = vmatprep.subr.mxu0 0.0
    %2060 = vmatpush2.msra.mxu0 0.0
    %2061 = vmatprep.subr.mxu0 0.0
    %2062 = vmatpush2.msra.mxu0 0.0
    %2063 = vmatprep.subr.mxu0 0.0
    %2064 = vmatpush2.msra.mxu0 0.0
    %2065 = vmatprep.subr.mxu0 0.0
    %2066 = vmatpush2.msra.mxu0 0.0
    %2067 = vmatprep.subr.mxu0 0.0
    %2068 = vmatpush2.msra.mxu0 0.0
    %2069 = vmatprep.subr.mxu0 0.0
    %2070 = vmatpush2.msra.mxu0 0.0
    %2071 = vmatprep.subr.mxu0 0.0
    %2072 = vmatpush2.msra.mxu0 0.0
    %2073 = vmatprep.mubr.f32.mxu0 0.0
    %v2074 = vand.u32 %v1218, 4294901760
    %v2075 = vsub.f32 %v1218, %v2074
    %2076 = vmatmul.mubr.f32.gmra.mxu0 %v2075
    %v2077 = vpop.f32.mrf.mxu0
    %v2078 = vadd.f32 %v1994, %v2077
    %v2079 = vpop.f32.mrf.mxu0
    %2080 = vdwg.mxu0
    %2081 = vmatprep.subr.mxu0 0.0
    %2082 = vmatpush1.msra.mxu0 0.0
    %2083 = vmatprep.subr.mxu0 0.0
    %2084 = vmatpush1.msra.mxu0 0.0
    %2085 = vmatprep.subr.mxu0 0.0
    %2086 = vmatpush1.msra.mxu0 0.0
    %2087 = vmatprep.subr.mxu0 0.0
    %2088 = vmatpush1.msra.mxu0 0.0
    %2089 = vmatprep.subr.mxu0 0.0
    %2090 = vmatpush1.msra.mxu0 0.0
    %2091 = vmatprep.subr.mxu0 0.0
    %2092 = vmatpush1.msra.mxu0 0.0
    %2093 = vmatprep.subr.mxu0 0.0
    %2094 = vmatpush1.msra.mxu0 0.0
    %2095 = vmatprep.subr.mxu0 0.0
    %2096 = vmatpush1.msra.mxu0 0.0
    %2097 = vmatprep.subr.mxu0 0.0
    %2098 = vmatpush1.msra.mxu0 0.0
    %2099 = vmatprep.subr.mxu0 0.0
    %2100 = vmatpush1.msra.mxu0 0.0
    %2101 = vmatprep.subr.mxu0 0.0
    %v2102 = vand.u32 %v88, 4294901760
    %2103 = vmatpush1.msra.mxu0 %v2102
    %2104 = vmatprep.subr.mxu0 0.0
    %v2105 = vand.u32 %v85, 4294901760
    %2106 = vmatpush1.msra.mxu0 %v2105
    %2107 = vmatprep.subr.mxu0 0.0
    %v2108 = vand.u32 %v82, 4294901760
    %2109 = vmatpush1.msra.mxu0 %v2108
    %2110 = vmatprep.subr.mxu0 0.0
    %v2111 = vand.u32 %v79, 4294901760
    %2112 = vmatpush1.msra.mxu0 %v2111
    %2113 = vmatprep.subr.mxu0 0.0
    %v2114 = vand.u32 %v76, 4294901760
    %2115 = vmatpush1.msra.mxu0 %v2114
    %2116 = vmatprep.subr.mxu0 0.0
    %v2117 = vand.u32 %v73, 4294901760
    %2118 = vmatpush1.msra.mxu0 %v2117
    %2119 = vmatprep.subr.mxu0 0.0
    %2120 = vmatpush2.msra.mxu0 0.0
    %2121 = vmatprep.subr.mxu0 0.0
    %2122 = vmatpush2.msra.mxu0 0.0
    %2123 = vmatprep.subr.mxu0 0.0
    %2124 = vmatpush2.msra.mxu0 0.0
    %2125 = vmatprep.subr.mxu0 0.0
    %2126 = vmatpush2.msra.mxu0 0.0
    %2127 = vmatprep.subr.mxu0 0.0
    %2128 = vmatpush2.msra.mxu0 0.0
    %2129 = vmatprep.subr.mxu0 0.0
    %2130 = vmatpush2.msra.mxu0 0.0
    %2131 = vmatprep.subr.mxu0 0.0
    %2132 = vmatpush2.msra.mxu0 0.0
    %2133 = vmatprep.subr.mxu0 0.0
    %2134 = vmatpush2.msra.mxu0 0.0
    %2135 = vmatprep.subr.mxu0 0.0
    %2136 = vmatpush2.msra.mxu0 0.0
    %2137 = vmatprep.subr.mxu0 0.0
    %2138 = vmatpush2.msra.mxu0 0.0
    %2139 = vmatprep.subr.mxu0 0.0
    %2140 = vmatpush2.msra.mxu0 0.0
    %2141 = vmatprep.subr.mxu0 0.0
    %2142 = vmatpush2.msra.mxu0 0.0
    %2143 = vmatprep.subr.mxu0 0.0
    %2144 = vmatpush2.msra.mxu0 0.0
    %2145 = vmatprep.subr.mxu0 0.0
    %2146 = vmatpush2.msra.mxu0 0.0
    %2147 = vmatprep.subr.mxu0 0.0
    %2148 = vmatpush2.msra.mxu0 0.0
    %2149 = vmatprep.subr.mxu0 0.0
    %2150 = vmatpush2.msra.mxu0 0.0
    %2151 = vmatprep.mubr.f32.mxu0 0.0
    %v2152 = vand.u32 %v1218, 4294901760
    %v2153 = vsub.f32 %v1218, %v2152
    %v2154 = vand.u32 %v2153, 4294901760
    %2155 = vmatmul.mubr.f32.gmra.mxu0 %v2154
    %v2156 = vpop.f32.mrf.mxu0
    %v2157 = vadd.f32 %v2078, %v2156
    %v2158 = vpop.f32.mrf.mxu0
    %2159 = vdwg.mxu0
    %2160 = vmatprep.subr.mxu0 0.0
    %2161 = vmatpush1.msra.mxu0 0.0
    %2162 = vmatprep.subr.mxu0 0.0
    %2163 = vmatpush1.msra.mxu0 0.0
    %2164 = vmatprep.subr.mxu0 0.0
    %2165 = vmatpush1.msra.mxu0 0.0
    %2166 = vmatprep.subr.mxu0 0.0
    %2167 = vmatpush1.msra.mxu0 0.0
    %2168 = vmatprep.subr.mxu0 0.0
    %2169 = vmatpush1.msra.mxu0 0.0
    %2170 = vmatprep.subr.mxu0 0.0
    %2171 = vmatpush1.msra.mxu0 0.0
    %2172 = vmatprep.subr.mxu0 0.0
    %2173 = vmatpush1.msra.mxu0 0.0
    %2174 = vmatprep.subr.mxu0 0.0
    %2175 = vmatpush1.msra.mxu0 0.0
    %2176 = vmatprep.subr.mxu0 0.0
    %2177 = vmatpush1.msra.mxu0 0.0
    %2178 = vmatprep.subr.mxu0 0.0
    %2179 = vmatpush1.msra.mxu0 0.0
    %2180 = vmatprep.subr.mxu0 0.0
    %v2181 = vand.u32 %v88, 4294901760
    %v2182 = vsub.f32 %v88, %v2181
    %v2183 = vand.u32 %v2182, 4294901760
    %2184 = vmatpush1.msra.mxu0 %v2183
    %2185 = vmatprep.subr.mxu0 0.0
    %v2186 = vand.u32 %v85, 4294901760
    %v2187 = vsub.f32 %v85, %v2186
    %v2188 = vand.u32 %v2187, 4294901760
    %2189 = vmatpush1.msra.mxu0 %v2188
    %2190 = vmatprep.subr.mxu0 0.0
    %v2191 = vand.u32 %v82, 4294901760
    %v2192 = vsub.f32 %v82, %v2191
    %v2193 = vand.u32 %v2192, 4294901760
    %2194 = vmatpush1.msra.mxu0 %v2193
    %2195 = vmatprep.subr.mxu0 0.0
    %v2196 = vand.u32 %v79, 4294901760
    %v2197 = vsub.f32 %v79, %v2196
    %v2198 = vand.u32 %v2197, 4294901760
    %2199 = vmatpush1.msra.mxu0 %v2198
    %2200 = vmatprep.subr.mxu0 0.0
    %v2201 = vand.u32 %v76, 4294901760
    %v2202 = vsub.f32 %v76, %v2201
    %v2203 = vand.u32 %v2202, 4294901760
    %2204 = vmatpush1.msra.mxu0 %v2203
    %2205 = vmatprep.subr.mxu0 0.0
    %v2206 = vand.u32 %v73, 4294901760
    %v2207 = vsub.f32 %v73, %v2206
    %v2208 = vand.u32 %v2207, 4294901760
    %2209 = vmatpush1.msra.mxu0 %v2208
    %2210 = vmatprep.subr.mxu0 0.0
    %2211 = vmatpush2.msra.mxu0 0.0
    %2212 = vmatprep.subr.mxu0 0.0
    %2213 = vmatpush2.msra.mxu0 0.0
    %2214 = vmatprep.subr.mxu0 0.0
    %2215 = vmatpush2.msra.mxu0 0.0
    %2216 = vmatprep.subr.mxu0 0.0
    %2217 = vmatpush2.msra.mxu0 0.0
    %2218 = vmatprep.subr.mxu0 0.0
    %2219 = vmatpush2.msra.mxu0 0.0
    %2220 = vmatprep.subr.mxu0 0.0
    %2221 = vmatpush2.msra.mxu0 0.0
    %2222 = vmatprep.subr.mxu0 0.0
    %2223 = vmatpush2.msra.mxu0 0.0
    %2224 = vmatprep.subr.mxu0 0.0
    %2225 = vmatpush2.msra.mxu0 0.0
    %2226 = vmatprep.subr.mxu0 0.0
    %2227 = vmatpush2.msra.mxu0 0.0
    %2228 = vmatprep.subr.mxu0 0.0
    %2229 = vmatpush2.msra.mxu0 0.0
    %2230 = vmatprep.subr.mxu0 0.0
    %2231 = vmatpush2.msra.mxu0 0.0
    %2232 = vmatprep.subr.mxu0 0.0
    %2233 = vmatpush2.msra.mxu0 0.0
    %2234 = vmatprep.subr.mxu0 0.0
    %2235 = vmatpush2.msra.mxu0 0.0
    %2236 = vmatprep.subr.mxu0 0.0
    %2237 = vmatpush2.msra.mxu0 0.0
    %2238 = vmatprep.subr.mxu0 0.0
    %2239 = vmatpush2.msra.mxu0 0.0
    %2240 = vmatprep.subr.mxu0 0.0
    %2241 = vmatpush2.msra.mxu0 0.0
    %2242 = vmatprep.mubr.f32.mxu0 0.0
    %v2243 = vand.u32 %v1218, 4294901760
    %2244 = vmatmul.mubr.f32.gmra.mxu0 %v2243
    %v2245 = vpop.f32.mrf.mxu0
    %v2246 = vadd.f32 %v2157, %v2245
    %v2247 = vpop.f32.mrf.mxu0
    %2248 = vdwg.mxu0
    %2249 = vmatprep.subr.mxu0 0.0
    %2250 = vmatpush1.msra.mxu0 0.0
    %2251 = vmatprep.subr.mxu0 0.0
    %2252 = vmatpush1.msra.mxu0 0.0
    %2253 = vmatprep.subr.mxu0 0.0
    %2254 = vmatpush1.msra.mxu0 0.0
    %2255 = vmatprep.subr.mxu0 0.0
    %2256 = vmatpush1.msra.mxu0 0.0
    %2257 = vmatprep.subr.mxu0 0.0
    %2258 = vmatpush1.msra.mxu0 0.0
    %2259 = vmatprep.subr.mxu0 0.0
    %2260 = vmatpush1.msra.mxu0 0.0
    %2261 = vmatprep.subr.mxu0 0.0
    %2262 = vmatpush1.msra.mxu0 0.0
    %2263 = vmatprep.subr.mxu0 0.0
    %2264 = vmatpush1.msra.mxu0 0.0
    %2265 = vmatprep.subr.mxu0 0.0
    %2266 = vmatpush1.msra.mxu0 0.0
    %2267 = vmatprep.subr.mxu0 0.0
    %2268 = vmatpush1.msra.mxu0 0.0
    %2269 = vmatprep.subr.mxu0 0.0
    %v2270 = vand.u32 %v88, 4294901760
    %2271 = vmatpush1.msra.mxu0 %v2270
    %2272 = vmatprep.subr.mxu0 0.0
    %v2273 = vand.u32 %v85, 4294901760
    %2274 = vmatpush1.msra.mxu0 %v2273
    %2275 = vmatprep.subr.mxu0 0.0
    %v2276 = vand.u32 %v82, 4294901760
    %2277 = vmatpush1.msra.mxu0 %v2276
    %2278 = vmatprep.subr.mxu0 0.0
    %v2279 = vand.u32 %v79, 4294901760
    %2280 = vmatpush1.msra.mxu0 %v2279
    %2281 = vmatprep.subr.mxu0 0.0
    %v2282 = vand.u32 %v76, 4294901760
    %2283 = vmatpush1.msra.mxu0 %v2282
    %2284 = vmatprep.subr.mxu0 0.0
    %v2285 = vand.u32 %v73, 4294901760
    %2286 = vmatpush1.msra.mxu0 %v2285
    %2287 = vmatprep.subr.mxu0 0.0
    %2288 = vmatpush2.msra.mxu0 0.0
    %2289 = vmatprep.subr.mxu0 0.0
    %2290 = vmatpush2.msra.mxu0 0.0
    %2291 = vmatprep.subr.mxu0 0.0
    %2292 = vmatpush2.msra.mxu0 0.0
    %2293 = vmatprep.subr.mxu0 0.0
    %2294 = vmatpush2.msra.mxu0 0.0
    %2295 = vmatprep.subr.mxu0 0.0
    %2296 = vmatpush2.msra.mxu0 0.0
    %2297 = vmatprep.subr.mxu0 0.0
    %2298 = vmatpush2.msra.mxu0 0.0
    %2299 = vmatprep.subr.mxu0 0.0
    %2300 = vmatpush2.msra.mxu0 0.0
    %2301 = vmatprep.subr.mxu0 0.0
    %2302 = vmatpush2.msra.mxu0 0.0
    %2303 = vmatprep.subr.mxu0 0.0
    %2304 = vmatpush2.msra.mxu0 0.0
    %2305 = vmatprep.subr.mxu0 0.0
    %2306 = vmatpush2.msra.mxu0 0.0
    %2307 = vmatprep.subr.mxu0 0.0
    %2308 = vmatpush2.msra.mxu0 0.0
    %2309 = vmatprep.subr.mxu0 0.0
    %2310 = vmatpush2.msra.mxu0 0.0
    %2311 = vmatprep.subr.mxu0 0.0
    %2312 = vmatpush2.msra.mxu0 0.0
    %2313 = vmatprep.subr.mxu0 0.0
    %2314 = vmatpush2.msra.mxu0 0.0
    %2315 = vmatprep.subr.mxu0 0.0
    %2316 = vmatpush2.msra.mxu0 0.0
    %2317 = vmatprep.subr.mxu0 0.0
    %2318 = vmatpush2.msra.mxu0 0.0
    %2319 = vmatprep.mubr.f32.mxu0 0.0
    %v2320 = vand.u32 %v1218, 4294901760
    %2321 = vmatmul.mubr.f32.gmra.mxu0 %v2320
    %v2322 = vpop.f32.mrf.mxu0
    %v2323 = vadd.f32 %v2246, %v2322
    %v2324 = vpop.f32.mrf.mxu0
    %2325 = vdwg.mxu0
    %2326 = vst [vmem:[#allocation10] sm:$0xff] %v1811
    %2327 = vst [vmem:[#allocation10 + $0x8] sm:$0xff] %v1813
    %2328 = vst [vmem:[#allocation10 + $0x10] sm:$0xff] %v2323
    // Predicated region
    $region34: #{tpu_custom_call.1} parent=1 // pred_check
      _
    $region35: #{tpu_custom_call.1} parent=1 // pred_check_branch
      %2330 = sbr.rel (0) target = $region37
    $region36: #{tpu_custom_call.1} parent=1 // pred_region
      %s2332 = ssub.s32 384, 384
      %2333 = vsyncadd [#allocation4], %s2332
      %s2335 = sshll.u32 [#allocation10], 4
      %s2336 = int_to_ptr.vmem [resolvable:$true] %s2335
      %2338 = dma.vmem_to_hbm [thread:$0]  %s2336, 384, %s4, [#allocation4]
    $region37: #{tpu_custom_call.1} parent=1 // pred_fallthru
      _
    // Predicated region
    $region38: #{tpu_custom_call.1} parent=1 // pred_check
      _
    $region39: #{tpu_custom_call.1} parent=1 // pred_check_branch
      %2340 = sbr.rel (0) target = $region41
    $region40: #{tpu_custom_call.1} parent=1 // pred_region
      %2341 = dma.done [#allocation4], 384
    $region41: #{tpu_custom_call.1} parent=1 // pred_fallthru
      _
    %2342 = vsyncpa [#allocation3], 1
    %2343 = vsyncpa [#allocation6], 1
    %2344 = vsyncpa [#allocation9], 1
    %2345 = vsyncpa [#allocation4], 1

</llo_original>
